<compile_context>
chip_gen: v7x
topology: tpu7x:2x2x1
jax: 0.10.0
libtpu: 0.0.40
codegen_flags: <defaults>
</compile_context>

<pallas_src>
import functools

import jax
import jax.numpy as jnp
from jax.experimental import pallas as pl
from jax.experimental.pallas import tpu as pltpu


def _layernorm(x, gamma, beta, eps=1e-5):
    # One-pass mean/variance (var = E[x^2] - E[x]^2): one VPU sweep over the
    # (R, E) block instead of a second (x - mean)^2 pass.
    mean = jnp.mean(x, axis=-1, keepdims=True)
    mean_sq = jnp.mean(x * x, axis=-1, keepdims=True)
    var = mean_sq - mean * mean
    inv = jax.lax.rsqrt(var + eps)
    return (x - mean) * inv * gamma + beta


def _transformer_layer_kernel(
    x_ref,                 # (R, E) f32, R = Bt*S
    wqkv_ref, bqkv_ref,    # (E, 3E) bf16 (Q cols pre-scaled by 1/scale), (1, 3E) f32
    ln1g_ref, ln1b_ref,    # (1, E) f32
    w1_ref, b1_ref,        # (E, F) bf16, (1, F) f32
    w2_ref, b2_ref,        # (F, E) bf16, (1, E) f32
    ln2g_ref, ln2b_ref,    # (1, E) f32
    o_ref,                 # (R, E)
    attn_ref,              # (R, E) f32 VMEM scratch: per-head context lands here
    *,
    num_heads: int,
    seq_len: int,
):
    x = x_ref[...]                      # (R, E) f32
    R, E = x.shape
    D = E // num_heads
    bt = R // seq_len                   # sequences in this block
    x_bf = x.astype(jnp.bfloat16)       # MXU operand; f32 copy kept for residual

    # --- fused QKV projection: one lane-dense (R,E)@(E,3E) MXU matmul --------
    qkv = jnp.dot(x_bf, wqkv_ref[...],
                  preferred_element_type=jnp.float32) + bqkv_ref[...]   # (R, 3E) f32

    # --- multi-head attention ------------------------------------------------
    # Per-head Q/K/V come from static lane slices of the fused projection; each
    # head's output is written directly to the VMEM scratch at lane offset h*D,
    # so there is no concatenate and no head output stays live past its store.
    for h in range(num_heads):
        lo = h * D
        q = qkv[:, lo:lo + D].reshape(bt, seq_len, D).astype(jnp.bfloat16)
        k = qkv[:, E + lo:E + lo + D].reshape(bt, seq_len, D).astype(jnp.bfloat16)
        v = qkv[:, 2 * E + lo:2 * E + lo + D].reshape(bt, seq_len, D).astype(jnp.bfloat16)

        # Scores (1/scale already folded into the Q projection): (Bt, S, S) f32.
        s = jnp.einsum("bqd,bkd->bqk", q, k, preferred_element_type=jnp.float32)
        s = s - jnp.max(s, axis=-1, keepdims=True)
        ex = jnp.exp(s)
        p = ex * pl.reciprocal(jnp.sum(ex, axis=-1, keepdims=True), approx=True)

        o = jnp.einsum("bqk,bkd->bqd", p.astype(jnp.bfloat16), v,
                       preferred_element_type=jnp.float32)               # (Bt, S, D)
        attn_ref[:, lo:lo + D] = o.reshape(R, D)
        # TODO(synk): KV-tile with an online-softmax inner loop once Bt*S*S*4
        # bytes reaches MiB scale (v7x's 64 MiB VMEM); irrelevant at S=8.

    # --- residual + LayerNorm 1 (f32 elementwise) ----------------------------
    h1 = _layernorm(x + attn_ref[...], ln1g_ref[...], ln1b_ref[...])

    # --- positionwise feed-forward (bf16 MXU inputs, f32 accumulation) -------
    ff = jnp.dot(h1.astype(jnp.bfloat16), w1_ref[...],
                 preferred_element_type=jnp.float32) + b1_ref[...]
    ff = jnp.maximum(ff, 0.0)
    ff = jnp.dot(ff.astype(jnp.bfloat16), w2_ref[...],
                 preferred_element_type=jnp.float32) + b2_ref[...]
    # TODO(synk): Dropout layers are identity (p=0.0 / eval mode); no RNG needed.

    # --- residual + LayerNorm 2 ----------------------------------------------
    o_ref[...] = _layernorm(h1 + ff, ln2g_ref[...], ln2b_ref[...]).astype(o_ref.dtype)


def _pick_vmem_limit():
    """Scoped-VMEM limit: raise above the 16/32 MiB defaults so larger row
    blocks fit, but stay well inside physical VMEM (v5e/v6e 128 MiB, v7x 64)."""
    cap = 64 * 1024 * 1024
    try:
        cap = int(pltpu.get_tpu_info().vmem_capacity_bytes)
    except Exception:
        pass  # conservative default works on all generations
    return int(max(32 * 1024 * 1024, min(cap * 3 // 4, 96 * 1024 * 1024)))


def _pick_block_batch(batch, seq, emb, hidden, vmem_limit, target_rows=512):
    """Sequences per grid step.

    Aim for >= target_rows MXU rows per block (amortizes the ~0.35us/step
    pipeline overhead), keep >= 2 grid steps when possible (v7x: 2 TensorCores
    share the parallel axis), keep Bt*S a multiple of 8 (sublane-clean
    reshapes), and bound per-block f32 activations to a fraction of VMEM.
    """
    divisors = [d for d in range(1, batch + 1) if batch % d == 0]
    aligned = [d for d in divisors if (d * seq) % 8 == 0] or [batch]

    def act_bytes(d):
        rows = d * seq
        # x, qkv(3E), attn scratch, h1, out (~7E f32) + ffn (2F f32) + scores.
        return 4 * rows * (7 * emb + 2 * hidden) + 8 * d * seq * seq

    budget = vmem_limit // 4            # headroom for weights + I/O double buffers
    fits = [d for d in aligned if act_bytes(d) <= budget] or aligned[:1]
    bt = next((d for d in fits if d * seq >= target_rows), fits[-1])
    if batch // bt < 2:                 # v7x: 2 TensorCores share the parallel axis
        smaller = [d for d in fits if batch // d >= 2]
        if smaller:
            bt = smaller[-1]
    return bt


def transformer_layer(x, params, num_heads):
    B, S, E = x.shape
    assert E % num_heads == 0
    F = params["w1"].shape[1]

    vmem_limit = _pick_vmem_limit()
    bt = _pick_block_batch(B, S, E, F, vmem_limit)
    R = bt * S
    grid = (B // bt,)

    # --- wrapper-side parameter prep (plain XLA, once per call) --------------
    inv_scale = 1.0 / params["scale"][0, 0]
    # Fuse Q/K/V into one (E, 3E) weight, folding 1/scale into the Q columns so
    # the kernel neither slices per head for the projection nor divides by the
    # learned scale.
    wqkv = jnp.concatenate(
        [params["wq"] * inv_scale, params["wk"], params["wv"]], axis=1
    ).astype(jnp.bfloat16)
    bqkv = jnp.concatenate(
        [params["bq"] * inv_scale, params["bk"], params["bv"]], axis=1
    ).astype(jnp.float32)
    # TODO(synk): on v7x, w1/w2 could be stored fp8 (bf16 x fp8 MXU) with a
    # per-tensor scale folded into the f32 accumulator; needs accuracy checks.

    param_list = [
        wqkv, bqkv,
        params["ln1_g"], params["ln1_b"],
        params["w1"].astype(jnp.bfloat16), params["b1"],
        params["w2"].astype(jnp.bfloat16), params["b2"],
        params["ln2_g"], params["ln2_b"],
    ]

    def full_spec(p):
        # Resident weights: constant index_map -> DMA'd once, no re-fetch.
        # TODO(synk): pipeline_mode=pl.Buffered(1) would halve resident-weight
        # VMEM at real model sizes on v7x; left off pending support validation.
        nd = p.ndim
        return pl.BlockSpec(p.shape, lambda i, _nd=nd: (0,) * _nd)

    x2d = x.reshape(B * S, E)
    in_specs = [pl.BlockSpec((R, E), lambda i: (i, 0))]
    in_specs += [full_spec(p) for p in param_list]

    # Output layout: full-row (R, E) blocks keep the HBM writeback fully
    # contiguous.  At realistic E (multiple of 128) these stores are already
    # unmasked and lane-dense.  At this test shape (E=32, R*E=256) the whole
    # block fits in one vreg, so the writeback is already a single store per
    # block; a (Bt, S*E) slab repack or padding E to 128 cannot reduce the
    # store count and would only add a sublane->lane relayout / 4x write bytes.
    out_spec = pl.BlockSpec((R, E), lambda i: (i, 0))

    kernel = functools.partial(
        _transformer_layer_kernel, num_heads=num_heads, seq_len=S)

    out2d = pl.pallas_call(
        kernel,
        out_shape=jax.ShapeDtypeStruct((B * S, E), x.dtype),
        grid_spec=pltpu.PrefetchScalarGridSpec(
            num_scalar_prefetch=0,
            grid=grid,
            in_specs=in_specs,
            out_specs=out_spec,
            scratch_shapes=[pltpu.VMEM((R, E), jnp.float32)],
        ),
        compiler_params=pltpu.CompilerParams(
            dimension_semantics=("parallel",),
            vmem_limit_bytes=vmem_limit,
        ),
    )(x2d, *param_list)
    return out2d.reshape(B, S, E)


def transformer_layer_reference(x, params, num_heads):
    """Pure-JAX f32 reference matching the PyTorch TransformerLayer forward."""
    B, S, E = x.shape
    D = E // num_heads
    q = x @ params["wq"] + params["bq"]
    k = x @ params["wk"] + params["bk"]
    v = x @ params["wv"] + params["bv"]

    def split(t):
        return t.reshape(B, S, num_heads, D).transpose(0, 2, 1, 3)

    qh, kh, vh = split(q), split(k), split(v)
    scores = jnp.einsum("bhqd,bhkd->bhqk", qh, kh) / params["scale"][0, 0]
    w = jax.nn.softmax(scores, axis=-1)
    attn = jnp.einsum("bhqk,bhkd->bhqd", w, vh).transpose(0, 2, 1, 3).reshape(B, S, E)

    def ln(t, g, b, eps=1e-5):
        m = t.mean(-1, keepdims=True)
        var = ((t - m) ** 2).mean(-1, keepdims=True)
        return (t - m) * jax.lax.rsqrt(var + eps) * g + b

    h1 = ln(x + attn, params["ln1_g"], params["ln1_b"])
    ff = jnp.maximum(h1 @ params["w1"] + params["b1"], 0.0) @ params["w2"] + params["b2"]
    return ln(h1 + ff, params["ln2_g"], params["ln2_b"])


def init_params(key, emb_dim, num_heads, hidden_dim):
    head_dim = emb_dim // num_heads
    ks = jax.random.split(key, 10)
    scale_init = 0.02

    def w(k, shape):
        return (scale_init * jax.random.normal(k, shape)).astype(jnp.float32)

    return {
        # linear weights stored as (in, out)  == torch weight.T
        "wq": w(ks[0], (emb_dim, emb_dim)),
        "bq": w(ks[1], (1, emb_dim)),
        "wk": w(ks[2], (emb_dim, emb_dim)),
        "bk": w(ks[3], (1, emb_dim)),
        "wv": w(ks[4], (emb_dim, emb_dim)),
        "bv": w(ks[5], (1, emb_dim)),
        # learned scale, initialized to sqrt(head_dim) as in the module
        "scale": jnp.full((1, 1), jnp.sqrt(jnp.float32(head_dim)), jnp.float32),
        # LayerNorm params: weight=1, bias=0 (PyTorch default init)
        "ln1_g": jnp.ones((1, emb_dim), jnp.float32),
        "ln1_b": jnp.zeros((1, emb_dim), jnp.float32),
        "ln2_g": jnp.ones((1, emb_dim), jnp.float32),
        "ln2_b": jnp.zeros((1, emb_dim), jnp.float32),
        # feed-forward
        "w1": w(ks[6], (emb_dim, hidden_dim)),
        "b1": w(ks[7], (1, hidden_dim)),
        "w2": w(ks[8], (hidden_dim, emb_dim)),
        "b2": w(ks[9], (1, emb_dim)),
    }


if __name__ == "__main__":
    B, S, E = 2, 8, 32
    NUM_HEADS = 4
    HIDDEN = 64

    key = jax.random.PRNGKey(0)
    k_x, k_p = jax.random.split(key)
    x = jax.random.normal(k_x, (B, S, E), dtype=jnp.float32)
    params = init_params(k_p, E, NUM_HEADS, HIDDEN)

    out = transformer_layer(x, params, NUM_HEADS)
    out = jax.block_until_ready(out)

    assert out.shape == (B, S, E), out.shape
    assert jnp.all(jnp.isfinite(out))

    # Sanity check against a pure-JAX f32 reference (kernel uses bf16 MXU
    # operands + approx reciprocal, so allow a generous tolerance).
    ref = transformer_layer_reference(x, params, NUM_HEADS)
    max_err = float(jnp.max(jnp.abs(out - ref)))
    assert max_err < 0.2, max_err

    print("KERNEL_OK")
</pallas_src>

<mosaic_0001>
module attributes {stable_mosaic.version = 11 : i64} {
  func.func @_transformer_layer_kernel(%arg0: i32, %arg1: memref<8x32xf32, #tpu.memory_space<vmem>>, %arg2: memref<32x96xbf16, #tpu.memory_space<vmem>>, %arg3: memref<1x96xf32, #tpu.memory_space<vmem>>, %arg4: memref<1x32xf32, #tpu.memory_space<vmem>>, %arg5: memref<1x32xf32, #tpu.memory_space<vmem>>, %arg6: memref<32x64xbf16, #tpu.memory_space<vmem>>, %arg7: memref<1x64xf32, #tpu.memory_space<vmem>>, %arg8: memref<64x32xbf16, #tpu.memory_space<vmem>>, %arg9: memref<1x32xf32, #tpu.memory_space<vmem>>, %arg10: memref<1x32xf32, #tpu.memory_space<vmem>>, %arg11: memref<1x32xf32, #tpu.memory_space<vmem>>, %arg12: memref<8x32xf32, #tpu.memory_space<vmem>>, %arg13: memref<8x32xf32, #tpu.memory_space<vmem>>) attributes {dimension_semantics = [#tpu.dimension_semantics<parallel>], iteration_bounds = array<i64: 2>, scalar_prefetch = 0 : i64, scratch_operands = 1 : i64, tpu.core_type = #tpu.core_type<tc>, window_params = [{transform_indices = @transform_0, window_bounds = array<i64: 8, 32>}, {pipeline_mode = #tpu.pipeline_mode<synchronous>, transform_indices = @transform_1, window_bounds = array<i64: 32, 96>}, {pipeline_mode = #tpu.pipeline_mode<synchronous>, transform_indices = @transform_2, window_bounds = array<i64: 1, 96>}, {pipeline_mode = #tpu.pipeline_mode<synchronous>, transform_indices = @transform_3, window_bounds = array<i64: 1, 32>}, {pipeline_mode = #tpu.pipeline_mode<synchronous>, transform_indices = @transform_4, window_bounds = array<i64: 1, 32>}, {pipeline_mode = #tpu.pipeline_mode<synchronous>, transform_indices = @transform_5, window_bounds = array<i64: 32, 64>}, {pipeline_mode = #tpu.pipeline_mode<synchronous>, transform_indices = @transform_6, window_bounds = array<i64: 1, 64>}, {pipeline_mode = #tpu.pipeline_mode<synchronous>, transform_indices = @transform_7, window_bounds = array<i64: 64, 32>}, {pipeline_mode = #tpu.pipeline_mode<synchronous>, transform_indices = @transform_8, window_bounds = array<i64: 1, 32>}, {pipeline_mode = #tpu.pipeline_mode<synchronous>, transform_indices = @transform_9, window_bounds = array<i64: 1, 32>}, {pipeline_mode = #tpu.pipeline_mode<synchronous>, transform_indices = @transform_10, window_bounds = array<i64: 1, 32>}, {transform_indices = @transform_11, window_bounds = array<i64: 8, 32>}]} {
    %c0 = arith.constant 0 : index
    %c0_0 = arith.constant 0 : index
    %0 = vector.load %arg1[%c0, %c0_0] : memref<8x32xf32, #tpu.memory_space<vmem>>, vector<8x32xf32>
    %1 = arith.truncf %0 : vector<8x32xf32> to vector<8x32xbf16>
    %c0_1 = arith.constant 0 : index
    %c0_2 = arith.constant 0 : index
    %2 = vector.load %arg2[%c0_1, %c0_2] : memref<32x96xbf16, #tpu.memory_space<vmem>>, vector<32x96xbf16>
    %cst = arith.constant dense<0.000000e+00> : vector<8x96xf32>
    %3 = tpu.matmul %1, %2, %cst {dimension_numbers = #tpu.dot_dimension_numbers<[1], [0], [0], [1], [0, 0, 1, 1], [], []>} : vector<8x32xbf16>, vector<32x96xbf16>, vector<8x96xf32> -> vector<8x96xf32>
    %c0_3 = arith.constant 0 : index
    %c0_4 = arith.constant 0 : index
    %4 = vector.load %arg3[%c0_3, %c0_4] : memref<1x96xf32, #tpu.memory_space<vmem>>, vector<1x96xf32>
    %5 = vector.broadcast %4 : vector<1x96xf32> to vector<8x96xf32>
    %6 = arith.addf %3, %5 : vector<8x96xf32>
    %7 = vector.extract_strided_slice %6 {offsets = [0, 0], sizes = [8, 8], strides = [1, 1]} : vector<8x96xf32> to vector<8x8xf32>
    %8 = vector.shape_cast %7 : vector<8x8xf32> to vector<1x8x8xf32>
    %9 = arith.truncf %8 : vector<1x8x8xf32> to vector<1x8x8xbf16>
    %10 = vector.extract_strided_slice %6 {offsets = [0, 32], sizes = [8, 8], strides = [1, 1]} : vector<8x96xf32> to vector<8x8xf32>
    %11 = vector.shape_cast %10 : vector<8x8xf32> to vector<1x8x8xf32>
    %12 = arith.truncf %11 : vector<1x8x8xf32> to vector<1x8x8xbf16>
    %13 = vector.extract_strided_slice %6 {offsets = [0, 64], sizes = [8, 8], strides = [1, 1]} : vector<8x96xf32> to vector<8x8xf32>
    %14 = vector.shape_cast %13 : vector<8x8xf32> to vector<1x8x8xf32>
    %15 = arith.truncf %14 : vector<1x8x8xf32> to vector<1x8x8xbf16>
    "tpu.trace_start"() <{level = 10 : i32, message = "bqd,bkd->bqk"}> : () -> ()
    %cst_5 = arith.constant dense<0.000000e+00> : vector<1x8x8xf32>
    %16 = tpu.matmul %9, %12, %cst_5 {dimension_numbers = #tpu.dot_dimension_numbers<[2], [2], [1], [1], [0, 0, 0, 1, 1, 1], [0], [0]>} : vector<1x8x8xbf16>, vector<1x8x8xbf16>, vector<1x8x8xf32> -> vector<1x8x8xf32>
    "tpu.trace_stop"() : () -> ()
    %cst_6 = arith.constant dense<0xFF800000> : vector<1x8xf32>
    %17 = vector.multi_reduction <maximumf>, %16, %cst_6 [2] : vector<1x8x8xf32> to vector<1x8xf32>
    %18 = vector.shape_cast %17 : vector<1x8xf32> to vector<1x8x1xf32>
    %19 = vector.broadcast %18 : vector<1x8x1xf32> to vector<1x8x8xf32>
    %20 = arith.subf %16, %19 : vector<1x8x8xf32>
    %21 = math.exp %20 : vector<1x8x8xf32>
    %cst_7 = arith.constant dense<0.000000e+00> : vector<1x8xf32>
    %22 = vector.multi_reduction <add>, %21, %cst_7 [2] : vector<1x8x8xf32> to vector<1x8xf32>
    %23 = vector.shape_cast %22 : vector<1x8xf32> to vector<1x8x1xf32>
    %24 = tpu.reciprocal %23 {approx = true} : vector<1x8x1xf32> -> vector<1x8x1xf32>
    %25 = vector.broadcast %24 : vector<1x8x1xf32> to vector<1x8x8xf32>
    %26 = arith.mulf %21, %25 : vector<1x8x8xf32>
    %27 = arith.truncf %26 : vector<1x8x8xf32> to vector<1x8x8xbf16>
    "tpu.trace_start"() <{level = 10 : i32, message = "bqk,bkd->bqd"}> : () -> ()
    %cst_8 = arith.constant dense<0.000000e+00> : vector<1x8x8xf32>
    %28 = tpu.matmul %27, %15, %cst_8 {dimension_numbers = #tpu.dot_dimension_numbers<[2], [1], [1], [2], [0, 0, 0, 1, 1, 2], [0], [0]>} : vector<1x8x8xbf16>, vector<1x8x8xbf16>, vector<1x8x8xf32> -> vector<1x8x8xf32>
    "tpu.trace_stop"() : () -> ()
    %29 = vector.shape_cast %28 : vector<1x8x8xf32> to vector<8x8xf32>
    %c0_9 = arith.constant 0 : index
    %c0_10 = arith.constant 0 : index
    %30 = vector.load %arg13[%c0_9, %c0_10] : memref<8x32xf32, #tpu.memory_space<vmem>>, vector<8x8xf32>
    tpu.vector_store %arg13[%c0_9, %c0_10], %29 {strides = array<i32>} : memref<8x32xf32, #tpu.memory_space<vmem>>, vector<8x8xf32>,
    %31 = vector.extract_strided_slice %6 {offsets = [0, 8], sizes = [8, 8], strides = [1, 1]} : vector<8x96xf32> to vector<8x8xf32>
    %32 = vector.shape_cast %31 : vector<8x8xf32> to vector<1x8x8xf32>
    %33 = arith.truncf %32 : vector<1x8x8xf32> to vector<1x8x8xbf16>
    %34 = vector.extract_strided_slice %6 {offsets = [0, 40], sizes = [8, 8], strides = [1, 1]} : vector<8x96xf32> to vector<8x8xf32>
    %35 = vector.shape_cast %34 : vector<8x8xf32> to vector<1x8x8xf32>
    %36 = arith.truncf %35 : vector<1x8x8xf32> to vector<1x8x8xbf16>
    %37 = vector.extract_strided_slice %6 {offsets = [0, 72], sizes = [8, 8], strides = [1, 1]} : vector<8x96xf32> to vector<8x8xf32>
    %38 = vector.shape_cast %37 : vector<8x8xf32> to vector<1x8x8xf32>
    %39 = arith.truncf %38 : vector<1x8x8xf32> to vector<1x8x8xbf16>
    "tpu.trace_start"() <{level = 10 : i32, message = "bqd,bkd->bqk"}> : () -> ()
    %cst_11 = arith.constant dense<0.000000e+00> : vector<1x8x8xf32>
    %40 = tpu.matmul %33, %36, %cst_11 {dimension_numbers = #tpu.dot_dimension_numbers<[2], [2], [1], [1], [0, 0, 0, 1, 1, 1], [0], [0]>} : vector<1x8x8xbf16>, vector<1x8x8xbf16>, vector<1x8x8xf32> -> vector<1x8x8xf32>
    "tpu.trace_stop"() : () -> ()
    %cst_12 = arith.constant dense<0xFF800000> : vector<1x8xf32>
    %41 = vector.multi_reduction <maximumf>, %40, %cst_12 [2] : vector<1x8x8xf32> to vector<1x8xf32>
    %42 = vector.shape_cast %41 : vector<1x8xf32> to vector<1x8x1xf32>
    %43 = vector.broadcast %42 : vector<1x8x1xf32> to vector<1x8x8xf32>
    %44 = arith.subf %40, %43 : vector<1x8x8xf32>
    %45 = math.exp %44 : vector<1x8x8xf32>
    %cst_13 = arith.constant dense<0.000000e+00> : vector<1x8xf32>
    %46 = vector.multi_reduction <add>, %45, %cst_13 [2] : vector<1x8x8xf32> to vector<1x8xf32>
    %47 = vector.shape_cast %46 : vector<1x8xf32> to vector<1x8x1xf32>
    %48 = tpu.reciprocal %47 {approx = true} : vector<1x8x1xf32> -> vector<1x8x1xf32>
    %49 = vector.broadcast %48 : vector<1x8x1xf32> to vector<1x8x8xf32>
    %50 = arith.mulf %45, %49 : vector<1x8x8xf32>
    %51 = arith.truncf %50 : vector<1x8x8xf32> to vector<1x8x8xbf16>
    "tpu.trace_start"() <{level = 10 : i32, message = "bqk,bkd->bqd"}> : () -> ()
    %cst_14 = arith.constant dense<0.000000e+00> : vector<1x8x8xf32>
    %52 = tpu.matmul %51, %39, %cst_14 {dimension_numbers = #tpu.dot_dimension_numbers<[2], [1], [1], [2], [0, 0, 0, 1, 1, 2], [0], [0]>} : vector<1x8x8xbf16>, vector<1x8x8xbf16>, vector<1x8x8xf32> -> vector<1x8x8xf32>
    "tpu.trace_stop"() : () -> ()
    %53 = vector.shape_cast %52 : vector<1x8x8xf32> to vector<8x8xf32>
    %c0_15 = arith.constant 0 : index
    %c8 = arith.constant 8 : index
    %54 = vector.load %arg13[%c0_15, %c8] : memref<8x32xf32, #tpu.memory_space<vmem>>, vector<8x8xf32>
    tpu.vector_store %arg13[%c0_15, %c8], %53 {strides = array<i32>} : memref<8x32xf32, #tpu.memory_space<vmem>>, vector<8x8xf32>,
    %55 = vector.extract_strided_slice %6 {offsets = [0, 16], sizes = [8, 8], strides = [1, 1]} : vector<8x96xf32> to vector<8x8xf32>
    %56 = vector.shape_cast %55 : vector<8x8xf32> to vector<1x8x8xf32>
    %57 = arith.truncf %56 : vector<1x8x8xf32> to vector<1x8x8xbf16>
    %58 = vector.extract_strided_slice %6 {offsets = [0, 48], sizes = [8, 8], strides = [1, 1]} : vector<8x96xf32> to vector<8x8xf32>
    %59 = vector.shape_cast %58 : vector<8x8xf32> to vector<1x8x8xf32>
    %60 = arith.truncf %59 : vector<1x8x8xf32> to vector<1x8x8xbf16>
    %61 = vector.extract_strided_slice %6 {offsets = [0, 80], sizes = [8, 8], strides = [1, 1]} : vector<8x96xf32> to vector<8x8xf32>
    %62 = vector.shape_cast %61 : vector<8x8xf32> to vector<1x8x8xf32>
    %63 = arith.truncf %62 : vector<1x8x8xf32> to vector<1x8x8xbf16>
    "tpu.trace_start"() <{level = 10 : i32, message = "bqd,bkd->bqk"}> : () -> ()
    %cst_16 = arith.constant dense<0.000000e+00> : vector<1x8x8xf32>
    %64 = tpu.matmul %57, %60, %cst_16 {dimension_numbers = #tpu.dot_dimension_numbers<[2], [2], [1], [1], [0, 0, 0, 1, 1, 1], [0], [0]>} : vector<1x8x8xbf16>, vector<1x8x8xbf16>, vector<1x8x8xf32> -> vector<1x8x8xf32>
    "tpu.trace_stop"() : () -> ()
    %cst_17 = arith.constant dense<0xFF800000> : vector<1x8xf32>
    %65 = vector.multi_reduction <maximumf>, %64, %cst_17 [2] : vector<1x8x8xf32> to vector<1x8xf32>
    %66 = vector.shape_cast %65 : vector<1x8xf32> to vector<1x8x1xf32>
    %67 = vector.broadcast %66 : vector<1x8x1xf32> to vector<1x8x8xf32>
    %68 = arith.subf %64, %67 : vector<1x8x8xf32>
    %69 = math.exp %68 : vector<1x8x8xf32>
    %cst_18 = arith.constant dense<0.000000e+00> : vector<1x8xf32>
    %70 = vector.multi_reduction <add>, %69, %cst_18 [2] : vector<1x8x8xf32> to vector<1x8xf32>
    %71 = vector.shape_cast %70 : vector<1x8xf32> to vector<1x8x1xf32>
    %72 = tpu.reciprocal %71 {approx = true} : vector<1x8x1xf32> -> vector<1x8x1xf32>
    %73 = vector.broadcast %72 : vector<1x8x1xf32> to vector<1x8x8xf32>
    %74 = arith.mulf %69, %73 : vector<1x8x8xf32>
    %75 = arith.truncf %74 : vector<1x8x8xf32> to vector<1x8x8xbf16>
    "tpu.trace_start"() <{level = 10 : i32, message = "bqk,bkd->bqd"}> : () -> ()
    %cst_19 = arith.constant dense<0.000000e+00> : vector<1x8x8xf32>
    %76 = tpu.matmul %75, %63, %cst_19 {dimension_numbers = #tpu.dot_dimension_numbers<[2], [1], [1], [2], [0, 0, 0, 1, 1, 2], [0], [0]>} : vector<1x8x8xbf16>, vector<1x8x8xbf16>, vector<1x8x8xf32> -> vector<1x8x8xf32>
    "tpu.trace_stop"() : () -> ()
    %77 = vector.shape_cast %76 : vector<1x8x8xf32> to vector<8x8xf32>
    %c0_20 = arith.constant 0 : index
    %c16 = arith.constant 16 : index
    %78 = vector.load %arg13[%c0_20, %c16] : memref<8x32xf32, #tpu.memory_space<vmem>>, vector<8x8xf32>
    tpu.vector_store %arg13[%c0_20, %c16], %77 {strides = array<i32>} : memref<8x32xf32, #tpu.memory_space<vmem>>, vector<8x8xf32>,
    %79 = vector.extract_strided_slice %6 {offsets = [0, 24], sizes = [8, 8], strides = [1, 1]} : vector<8x96xf32> to vector<8x8xf32>
    %80 = vector.shape_cast %79 : vector<8x8xf32> to vector<1x8x8xf32>
    %81 = arith.truncf %80 : vector<1x8x8xf32> to vector<1x8x8xbf16>
    %82 = vector.extract_strided_slice %6 {offsets = [0, 56], sizes = [8, 8], strides = [1, 1]} : vector<8x96xf32> to vector<8x8xf32>
    %83 = vector.shape_cast %82 : vector<8x8xf32> to vector<1x8x8xf32>
    %84 = arith.truncf %83 : vector<1x8x8xf32> to vector<1x8x8xbf16>
    %85 = vector.extract_strided_slice %6 {offsets = [0, 88], sizes = [8, 8], strides = [1, 1]} : vector<8x96xf32> to vector<8x8xf32>
    %86 = vector.shape_cast %85 : vector<8x8xf32> to vector<1x8x8xf32>
    %87 = arith.truncf %86 : vector<1x8x8xf32> to vector<1x8x8xbf16>
    "tpu.trace_start"() <{level = 10 : i32, message = "bqd,bkd->bqk"}> : () -> ()
    %cst_21 = arith.constant dense<0.000000e+00> : vector<1x8x8xf32>
    %88 = tpu.matmul %81, %84, %cst_21 {dimension_numbers = #tpu.dot_dimension_numbers<[2], [2], [1], [1], [0, 0, 0, 1, 1, 1], [0], [0]>} : vector<1x8x8xbf16>, vector<1x8x8xbf16>, vector<1x8x8xf32> -> vector<1x8x8xf32>
    "tpu.trace_stop"() : () -> ()
    %cst_22 = arith.constant dense<0xFF800000> : vector<1x8xf32>
    %89 = vector.multi_reduction <maximumf>, %88, %cst_22 [2] : vector<1x8x8xf32> to vector<1x8xf32>
    %90 = vector.shape_cast %89 : vector<1x8xf32> to vector<1x8x1xf32>
    %91 = vector.broadcast %90 : vector<1x8x1xf32> to vector<1x8x8xf32>
    %92 = arith.subf %88, %91 : vector<1x8x8xf32>
    %93 = math.exp %92 : vector<1x8x8xf32>
    %cst_23 = arith.constant dense<0.000000e+00> : vector<1x8xf32>
    %94 = vector.multi_reduction <add>, %93, %cst_23 [2] : vector<1x8x8xf32> to vector<1x8xf32>
    %95 = vector.shape_cast %94 : vector<1x8xf32> to vector<1x8x1xf32>
    %96 = tpu.reciprocal %95 {approx = true} : vector<1x8x1xf32> -> vector<1x8x1xf32>
    %97 = vector.broadcast %96 : vector<1x8x1xf32> to vector<1x8x8xf32>
    %98 = arith.mulf %93, %97 : vector<1x8x8xf32>
    %99 = arith.truncf %98 : vector<1x8x8xf32> to vector<1x8x8xbf16>
    "tpu.trace_start"() <{level = 10 : i32, message = "bqk,bkd->bqd"}> : () -> ()
    %cst_24 = arith.constant dense<0.000000e+00> : vector<1x8x8xf32>
    %100 = tpu.matmul %99, %87, %cst_24 {dimension_numbers = #tpu.dot_dimension_numbers<[2], [1], [1], [2], [0, 0, 0, 1, 1, 2], [0], [0]>} : vector<1x8x8xbf16>, vector<1x8x8xbf16>, vector<1x8x8xf32> -> vector<1x8x8xf32>
    "tpu.trace_stop"() : () -> ()
    %101 = vector.shape_cast %100 : vector<1x8x8xf32> to vector<8x8xf32>
    %c0_25 = arith.constant 0 : index
    %c24 = arith.constant 24 : index
    %102 = vector.load %arg13[%c0_25, %c24] : memref<8x32xf32, #tpu.memory_space<vmem>>, vector<8x8xf32>
    tpu.vector_store %arg13[%c0_25, %c24], %101 {strides = array<i32>} : memref<8x32xf32, #tpu.memory_space<vmem>>, vector<8x8xf32>,
    %c0_26 = arith.constant 0 : index
    %c0_27 = arith.constant 0 : index
    %103 = vector.load %arg13[%c0_26, %c0_27] : memref<8x32xf32, #tpu.memory_space<vmem>>, vector<8x32xf32>
    %104 = arith.addf %0, %103 : vector<8x32xf32>
    %c0_28 = arith.constant 0 : index
    %c0_29 = arith.constant 0 : index
    %105 = vector.load %arg4[%c0_28, %c0_29] : memref<1x32xf32, #tpu.memory_space<vmem>>, vector<1x32xf32>
    %c0_30 = arith.constant 0 : index
    %c0_31 = arith.constant 0 : index
    %106 = vector.load %arg5[%c0_30, %c0_31] : memref<1x32xf32, #tpu.memory_space<vmem>>, vector<1x32xf32>
    %cst_32 = arith.constant dense<0.000000e+00> : vector<8xf32>
    %107 = vector.multi_reduction <add>, %104, %cst_32 [1] : vector<8x32xf32> to vector<8xf32>
    %108 = vector.shape_cast %107 : vector<8xf32> to vector<8x1xf32>
    %cst_33 = arith.constant 3.200000e+01 : f32
    %109 = vector.broadcast %cst_33 : f32 to vector<8x1xf32>
    %110 = arith.divf %108, %109 : vector<8x1xf32>
    %111 = arith.mulf %104, %104 : vector<8x32xf32>
    %cst_34 = arith.constant dense<0.000000e+00> : vector<8xf32>
    %112 = vector.multi_reduction <add>, %111, %cst_34 [1] : vector<8x32xf32> to vector<8xf32>
    %113 = vector.shape_cast %112 : vector<8xf32> to vector<8x1xf32>
    %cst_35 = arith.constant 3.200000e+01 : f32
    %114 = vector.broadcast %cst_35 : f32 to vector<8x1xf32>
    %115 = arith.divf %113, %114 : vector<8x1xf32>
    %116 = arith.mulf %110, %110 : vector<8x1xf32>
    %117 = arith.subf %115, %116 : vector<8x1xf32>
    %cst_36 = arith.constant 9.99999974E-6 : f32
    %118 = vector.broadcast %cst_36 : f32 to vector<8x1xf32>
    %119 = arith.addf %117, %118 : vector<8x1xf32>
    %120 = math.rsqrt %119 : vector<8x1xf32>
    %121 = vector.broadcast %110 : vector<8x1xf32> to vector<8x32xf32>
    %122 = arith.subf %104, %121 : vector<8x32xf32>
    %123 = vector.broadcast %120 : vector<8x1xf32> to vector<8x32xf32>
    %124 = arith.mulf %122, %123 : vector<8x32xf32>
    %125 = vector.broadcast %105 : vector<1x32xf32> to vector<8x32xf32>
    %126 = arith.mulf %124, %125 : vector<8x32xf32>
    %127 = vector.broadcast %106 : vector<1x32xf32> to vector<8x32xf32>
    %128 = arith.addf %126, %127 : vector<8x32xf32>
    %129 = arith.truncf %128 : vector<8x32xf32> to vector<8x32xbf16>
    %c0_37 = arith.constant 0 : index
    %c0_38 = arith.constant 0 : index
    %130 = vector.load %arg6[%c0_37, %c0_38] : memref<32x64xbf16, #tpu.memory_space<vmem>>, vector<32x64xbf16>
    %cst_39 = arith.constant dense<0.000000e+00> : vector<8x64xf32>
    %131 = tpu.matmul %129, %130, %cst_39 {dimension_numbers = #tpu.dot_dimension_numbers<[1], [0], [0], [1], [0, 0, 1, 1], [], []>} : vector<8x32xbf16>, vector<32x64xbf16>, vector<8x64xf32> -> vector<8x64xf32>
    %c0_40 = arith.constant 0 : index
    %c0_41 = arith.constant 0 : index
    %132 = vector.load %arg7[%c0_40, %c0_41] : memref<1x64xf32, #tpu.memory_space<vmem>>, vector<1x64xf32>
    %133 = vector.broadcast %132 : vector<1x64xf32> to vector<8x64xf32>
    %134 = arith.addf %131, %133 : vector<8x64xf32>
    %cst_42 = arith.constant 0.000000e+00 : f32
    %135 = vector.broadcast %cst_42 : f32 to vector<8x64xf32>
    %136 = arith.maximumf %134, %135 : vector<8x64xf32>
    %137 = arith.truncf %136 : vector<8x64xf32> to vector<8x64xbf16>
    %c0_43 = arith.constant 0 : index
    %c0_44 = arith.constant 0 : index
    %138 = vector.load %arg8[%c0_43, %c0_44] : memref<64x32xbf16, #tpu.memory_space<vmem>>, vector<64x32xbf16>
    %cst_45 = arith.constant dense<0.000000e+00> : vector<8x32xf32>
    %139 = tpu.matmul %137, %138, %cst_45 {dimension_numbers = #tpu.dot_dimension_numbers<[1], [0], [0], [1], [0, 0, 1, 1], [], []>} : vector<8x64xbf16>, vector<64x32xbf16>, vector<8x32xf32> -> vector<8x32xf32>
    %c0_46 = arith.constant 0 : index
    %c0_47 = arith.constant 0 : index
    %140 = vector.load %arg9[%c0_46, %c0_47] : memref<1x32xf32, #tpu.memory_space<vmem>>, vector<1x32xf32>
    %141 = vector.broadcast %140 : vector<1x32xf32> to vector<8x32xf32>
    %142 = arith.addf %139, %141 : vector<8x32xf32>
    %143 = arith.addf %128, %142 : vector<8x32xf32>
    %c0_48 = arith.constant 0 : index
    %c0_49 = arith.constant 0 : index
    %144 = vector.load %arg10[%c0_48, %c0_49] : memref<1x32xf32, #tpu.memory_space<vmem>>, vector<1x32xf32>
    %c0_50 = arith.constant 0 : index
    %c0_51 = arith.constant 0 : index
    %145 = vector.load %arg11[%c0_50, %c0_51] : memref<1x32xf32, #tpu.memory_space<vmem>>, vector<1x32xf32>
    %cst_52 = arith.constant dense<0.000000e+00> : vector<8xf32>
    %146 = vector.multi_reduction <add>, %143, %cst_52 [1] : vector<8x32xf32> to vector<8xf32>
    %147 = vector.shape_cast %146 : vector<8xf32> to vector<8x1xf32>
    %cst_53 = arith.constant 3.200000e+01 : f32
    %148 = vector.broadcast %cst_53 : f32 to vector<8x1xf32>
    %149 = arith.divf %147, %148 : vector<8x1xf32>
    %150 = arith.mulf %143, %143 : vector<8x32xf32>
    %cst_54 = arith.constant dense<0.000000e+00> : vector<8xf32>
    %151 = vector.multi_reduction <add>, %150, %cst_54 [1] : vector<8x32xf32> to vector<8xf32>
    %152 = vector.shape_cast %151 : vector<8xf32> to vector<8x1xf32>
    %cst_55 = arith.constant 3.200000e+01 : f32
    %153 = vector.broadcast %cst_55 : f32 to vector<8x1xf32>
    %154 = arith.divf %152, %153 : vector<8x1xf32>
    %155 = arith.mulf %149, %149 : vector<8x1xf32>
    %156 = arith.subf %154, %155 : vector<8x1xf32>
    %cst_56 = arith.constant 9.99999974E-6 : f32
    %157 = vector.broadcast %cst_56 : f32 to vector<8x1xf32>
    %158 = arith.addf %156, %157 : vector<8x1xf32>
    %159 = math.rsqrt %158 : vector<8x1xf32>
    %160 = vector.broadcast %149 : vector<8x1xf32> to vector<8x32xf32>
    %161 = arith.subf %143, %160 : vector<8x32xf32>
    %162 = vector.broadcast %159 : vector<8x1xf32> to vector<8x32xf32>
    %163 = arith.mulf %161, %162 : vector<8x32xf32>
    %164 = vector.broadcast %144 : vector<1x32xf32> to vector<8x32xf32>
    %165 = arith.mulf %163, %164 : vector<8x32xf32>
    %166 = vector.broadcast %145 : vector<1x32xf32> to vector<8x32xf32>
    %167 = arith.addf %165, %166 : vector<8x32xf32>
    %c0_57 = arith.constant 0 : index
    %c0_58 = arith.constant 0 : index
    %168 = vector.load %arg12[%c0_57, %c0_58] : memref<8x32xf32, #tpu.memory_space<vmem>>, vector<8x32xf32>
    tpu.vector_store %arg12[%c0_57, %c0_58], %167 {strides = array<i32>} : memref<8x32xf32, #tpu.memory_space<vmem>>, vector<8x32xf32>,
    return
  }
  func.func @transform_0(%arg0: i32) -> (i32, i32) {
    %c0_i32 = arith.constant 0 : i32
    %c0_i32_0 = arith.constant 0 : i32
    return %arg0, %c0_i32 : i32, i32
  }
  func.func @transform_1(%arg0: i32) -> (i32, i32) {
    %c0_i32 = arith.constant 0 : i32
    %c0_i32_0 = arith.constant 0 : i32
    %c0_i32_1 = arith.constant 0 : i32
    return %c0_i32, %c0_i32_0 : i32, i32
  }
  func.func @transform_2(%arg0: i32) -> (i32, i32) {
    %c0_i32 = arith.constant 0 : i32
    %c0_i32_0 = arith.constant 0 : i32
    %c0_i32_1 = arith.constant 0 : i32
    return %c0_i32, %c0_i32_0 : i32, i32
  }
  func.func @transform_3(%arg0: i32) -> (i32, i32) {
    %c0_i32 = arith.constant 0 : i32
    %c0_i32_0 = arith.constant 0 : i32
    %c0_i32_1 = arith.constant 0 : i32
    return %c0_i32, %c0_i32_0 : i32, i32
  }
  func.func @transform_4(%arg0: i32) -> (i32, i32) {
    %c0_i32 = arith.constant 0 : i32
    %c0_i32_0 = arith.constant 0 : i32
    %c0_i32_1 = arith.constant 0 : i32
    return %c0_i32, %c0_i32_0 : i32, i32
  }
  func.func @transform_5(%arg0: i32) -> (i32, i32) {
    %c0_i32 = arith.constant 0 : i32
    %c0_i32_0 = arith.constant 0 : i32
    %c0_i32_1 = arith.constant 0 : i32
    return %c0_i32, %c0_i32_0 : i32, i32
  }
  func.func @transform_6(%arg0: i32) -> (i32, i32) {
    %c0_i32 = arith.constant 0 : i32
    %c0_i32_0 = arith.constant 0 : i32
    %c0_i32_1 = arith.constant 0 : i32
    return %c0_i32, %c0_i32_0 : i32, i32
  }
  func.func @transform_7(%arg0: i32) -> (i32, i32) {
    %c0_i32 = arith.constant 0 : i32
    %c0_i32_0 = arith.constant 0 : i32
    %c0_i32_1 = arith.constant 0 : i32
    return %c0_i32, %c0_i32_0 : i32, i32
  }
  func.func @transform_8(%arg0: i32) -> (i32, i32) {
    %c0_i32 = arith.constant 0 : i32
    %c0_i32_0 = arith.constant 0 : i32
    %c0_i32_1 = arith.constant 0 : i32
    return %c0_i32, %c0_i32_0 : i32, i32
  }
  func.func @transform_9(%arg0: i32) -> (i32, i32) {
    %c0_i32 = arith.constant 0 : i32
    %c0_i32_0 = arith.constant 0 : i32
    %c0_i32_1 = arith.constant 0 : i32
    return %c0_i32, %c0_i32_0 : i32, i32
  }
  func.func @transform_10(%arg0: i32) -> (i32, i32) {
    %c0_i32 = arith.constant 0 : i32
    %c0_i32_0 = arith.constant 0 : i32
    %c0_i32_1 = arith.constant 0 : i32
    return %c0_i32, %c0_i32_0 : i32, i32
  }
  func.func @transform_11(%arg0: i32) -> (i32, i32) {
    %c0_i32 = arith.constant 0 : i32
    %c0_i32_0 = arith.constant 0 : i32
    return %arg0, %c0_i32 : i32, i32
  }
}

</mosaic_0001>

<llo_original>
// kernel: tpu_custom_call.1
$region0: #{tpu_custom_call.1}
  #allocation0 [shape = 'u32[]', space=smem, size = 0x4, offset = 0x4, fixed_abs, tag = 'smem constant byte address 0x4 - core index']
  #allocation1 [shape = 'u32[144,128]{1,0:T(1,128)}', space=vmem, size = 0x12000, scoped, tag = 'internal scratch']
  #allocation2 [shape = 'f32[8,32]{1,0:T(8,128)}', space=vmem, size = 0x1000, scoped, tag = 'scratch operand']
  %s0 = inlined_call_operand.vmem [shape: f32[16,32], index: 0, kind: input, shape index: {}]
  %s1 = inlined_call_operand.vmem [shape: bf16[32,96], index: 1, kind: input, shape index: {}]
  %s2 = inlined_call_operand.vmem [shape: f32[1,96], index: 2, kind: input, shape index: {}]
  %s3 = inlined_call_operand.vmem [shape: f32[1,32], index: 3, kind: input, shape index: {}]
  %s4 = inlined_call_operand.vmem [shape: f32[1,32], index: 4, kind: input, shape index: {}]
  %s5 = inlined_call_operand.vmem [shape: bf16[32,64], index: 5, kind: input, shape index: {}]
  %s6 = inlined_call_operand.vmem [shape: f32[1,64], index: 6, kind: input, shape index: {}]
  %s7 = inlined_call_operand.vmem [shape: bf16[64,32], index: 7, kind: input, shape index: {}]
  %s8 = inlined_call_operand.vmem [shape: f32[1,32], index: 8, kind: input, shape index: {}]
  %s9 = inlined_call_operand.vmem [shape: f32[1,32], index: 9, kind: input, shape index: {}]
  %s10 = inlined_call_operand.vmem [shape: f32[1,32], index: 10, kind: input, shape index: {}]
  %s11 = inlined_call_operand.hbm [shape: f32[16,32], index: 11, kind: output, shape index: {}]
  %s12 = sld [smem:[#allocation0]]
  $region77: #{tpu_custom_call.1} parent=0
    _
  %s14 = ssub.s32 1, %s12
  %s15 = scalar_select 0, %s14, %s12
  $region1: #{tpu_custom_call.1} parent=0
    #allocation3 [shape = 'u8[8192]{0}', space=vmem, size = 0x2000, scoped, tag = 'output window, operand 0']
    #allocation4 [shape = 's32[2]{0}', space=sflag, size = 0x8, scoped, tag = 'scoped memory for tpu_custom_call.1']
    %16 = vsyncpa [#allocation4], 0
    %s17 = scalar_lea.sflag [#allocation4], 1
    %18 = vsyncpa %s17, 0
    loop: start=0, step=1, limit=4
    $region2: #{tpu_custom_call.1} parent=1 // loop_pre_header
      _
    $region3: #{tpu_custom_call.1} parent=1 // loop_header
      %s20 = sphi 0, %s24
      %p21 = scmp.ge.s32.totalorder %s20, 4
      %s30 = sphi 0, %s32
      %s33 = sphi 0, %s30
      %s34 = sphi 0, %s33
      %s50 = sphi 0, %s34
      %s54 = sphi 0, %s54
      %s56 = sphi 0, %s54
      %s57 = sphi 0, %s56
      %s71 = sphi 0, %s57
      %s75 = sphi 0, %s75
      %s77 = sphi 0, %s75
      %s78 = sphi 0, %s77
      %s92 = sphi 0, %s78
      %s96 = sphi 0, %s96
      %s98 = sphi 0, %s96
      %s99 = sphi 0, %s98
      %s113 = sphi 0, %s99
      %s117 = sphi 0, %s117
      %s119 = sphi 0, %s117
      %s120 = sphi 0, %s119
      %s134 = sphi 0, %s120
      %s138 = sphi 0, %s138
      %s140 = sphi 0, %s138
      %s141 = sphi 0, %s140
      %s155 = sphi 0, %s141
      %s159 = sphi 0, %s159
      %s161 = sphi 0, %s159
      %s162 = sphi 0, %s161
      %s176 = sphi 0, %s162
      %s180 = sphi 0, %s180
      %s182 = sphi 0, %s180
      %s183 = sphi 0, %s182
      %s197 = sphi 0, %s183
      %s201 = sphi 0, %s201
      %s203 = sphi 0, %s201
      %s204 = sphi 0, %s203
      %s218 = sphi 0, %s204
      %s222 = sphi 0, %s222
      %s224 = sphi 0, %s222
      %s225 = sphi 0, %s224
      %s239 = sphi 0, %s225
      %s243 = sphi 0, %s243
      %s245 = sphi 0, %s243
      %s246 = sphi 0, %s245
      %s260 = sphi 0, %s246
      %s266 = sphi 0, %s268
      %s269 = sphi 0, %s266
      %s270 = sphi 0, %s269
      %s286 = sphi 0, %s270
    $region4: #{tpu_custom_call.1} parent=1 // loop_header_branch
      %23 = sbr.rel (%p21) target = $region8
    $region5: #{tpu_custom_call.1} parent=1 // loop_body
      %s25 = ssub.s32 %s20, 1
      %s26 = ssub.s32 %s20, 2
      %s27 = sadd.s32 %s20, 1
      %s28 = ssub.s32 %s20, %s27
      %p29 = scmp.eq.s32.totalorder %s28, 0
      %s31 = sadd.s32 %s30, 1
      %s32 = scalar_select %p29, %s30, %s31
      %p35 = pneg %p29
      %p36 = scmp.eq.s32.totalorder %s20, 1
      %p37 = por %p35, %p36
      %p38 = scmp.ne.s32.totalorder %s30, %s33
      %p39 = scmp.eq.s32.totalorder %s20, 0
      %p40 = por %p38, %p39
      %p41 = scmp.ne.s32.totalorder %s30, %s33
      %p42 = scmp.eq.s32.totalorder %s25, 1
      %p43 = por %p41, %p42
      %p44 = scmp.ne.s32.totalorder %s33, %s34
      %p45 = scmp.eq.s32.totalorder %s25, 0
      %p46 = por %p44, %p45
      %p47 = scmp.ne.s32.totalorder %s33, %s34
      %p48 = scmp.eq.s32.totalorder %s26, 1
      %p49 = por %p47, %p48
      %p51 = scmp.ne.s32.totalorder %s34, %s50
      %p52 = scmp.eq.s32.totalorder %s26, 0
      %p53 = por %p51, %p52
      %s55 = sadd.s32 %s54, 1
      %p58 = scmp.eq.s32.totalorder %s20, 1
      %p59 = scmp.ne.s32.totalorder %s54, %s56
      %p60 = scmp.eq.s32.totalorder %s20, 0
      %p61 = por %p59, %p60
      %p62 = scmp.ne.s32.totalorder %s54, %s56
      %p63 = scmp.eq.s32.totalorder %s25, 1
      %p64 = por %p62, %p63
      %p65 = scmp.ne.s32.totalorder %s56, %s57
      %p66 = scmp.eq.s32.totalorder %s25, 0
      %p67 = por %p65, %p66
      %p68 = scmp.ne.s32.totalorder %s56, %s57
      %p69 = scmp.eq.s32.totalorder %s26, 1
      %p70 = por %p68, %p69
      %p72 = scmp.ne.s32.totalorder %s57, %s71
      %p73 = scmp.eq.s32.totalorder %s26, 0
      %p74 = por %p72, %p73
      %s76 = sadd.s32 %s75, 1
      %p79 = scmp.eq.s32.totalorder %s20, 1
      %p80 = scmp.ne.s32.totalorder %s75, %s77
      %p81 = scmp.eq.s32.totalorder %s20, 0
      %p82 = por %p80, %p81
      %p83 = scmp.ne.s32.totalorder %s75, %s77
      %p84 = scmp.eq.s32.totalorder %s25, 1
      %p85 = por %p83, %p84
      %p86 = scmp.ne.s32.totalorder %s77, %s78
      %p87 = scmp.eq.s32.totalorder %s25, 0
      %p88 = por %p86, %p87
      %p89 = scmp.ne.s32.totalorder %s77, %s78
      %p90 = scmp.eq.s32.totalorder %s26, 1
      %p91 = por %p89, %p90
      %p93 = scmp.ne.s32.totalorder %s78, %s92
      %p94 = scmp.eq.s32.totalorder %s26, 0
      %p95 = por %p93, %p94
      %s97 = sadd.s32 %s96, 1
      %p100 = scmp.eq.s32.totalorder %s20, 1
      %p101 = scmp.ne.s32.totalorder %s96, %s98
      %p102 = scmp.eq.s32.totalorder %s20, 0
      %p103 = por %p101, %p102
      %p104 = scmp.ne.s32.totalorder %s96, %s98
      %p105 = scmp.eq.s32.totalorder %s25, 1
      %p106 = por %p104, %p105
      %p107 = scmp.ne.s32.totalorder %s98, %s99
      %p108 = scmp.eq.s32.totalorder %s25, 0
      %p109 = por %p107, %p108
      %p110 = scmp.ne.s32.totalorder %s98, %s99
      %p111 = scmp.eq.s32.totalorder %s26, 1
      %p112 = por %p110, %p111
      %p114 = scmp.ne.s32.totalorder %s99, %s113
      %p115 = scmp.eq.s32.totalorder %s26, 0
      %p116 = por %p114, %p115
      %s118 = sadd.s32 %s117, 1
      %p121 = scmp.eq.s32.totalorder %s20, 1
      %p122 = scmp.ne.s32.totalorder %s117, %s119
      %p123 = scmp.eq.s32.totalorder %s20, 0
      %p124 = por %p122, %p123
      %p125 = scmp.ne.s32.totalorder %s117, %s119
      %p126 = scmp.eq.s32.totalorder %s25, 1
      %p127 = por %p125, %p126
      %p128 = scmp.ne.s32.totalorder %s119, %s120
      %p129 = scmp.eq.s32.totalorder %s25, 0
      %p130 = por %p128, %p129
      %p131 = scmp.ne.s32.totalorder %s119, %s120
      %p132 = scmp.eq.s32.totalorder %s26, 1
      %p133 = por %p131, %p132
      %p135 = scmp.ne.s32.totalorder %s120, %s134
      %p136 = scmp.eq.s32.totalorder %s26, 0
      %p137 = por %p135, %p136
      %s139 = sadd.s32 %s138, 1
      %p142 = scmp.eq.s32.totalorder %s20, 1
      %p143 = scmp.ne.s32.totalorder %s138, %s140
      %p144 = scmp.eq.s32.totalorder %s20, 0
      %p145 = por %p143, %p144
      %p146 = scmp.ne.s32.totalorder %s138, %s140
      %p147 = scmp.eq.s32.totalorder %s25, 1
      %p148 = por %p146, %p147
      %p149 = scmp.ne.s32.totalorder %s140, %s141
      %p150 = scmp.eq.s32.totalorder %s25, 0
      %p151 = por %p149, %p150
      %p152 = scmp.ne.s32.totalorder %s140, %s141
      %p153 = scmp.eq.s32.totalorder %s26, 1
      %p154 = por %p152, %p153
      %p156 = scmp.ne.s32.totalorder %s141, %s155
      %p157 = scmp.eq.s32.totalorder %s26, 0
      %p158 = por %p156, %p157
      %s160 = sadd.s32 %s159, 1
      %p163 = scmp.eq.s32.totalorder %s20, 1
      %p164 = scmp.ne.s32.totalorder %s159, %s161
      %p165 = scmp.eq.s32.totalorder %s20, 0
      %p166 = por %p164, %p165
      %p167 = scmp.ne.s32.totalorder %s159, %s161
      %p168 = scmp.eq.s32.totalorder %s25, 1
      %p169 = por %p167, %p168
      %p170 = scmp.ne.s32.totalorder %s161, %s162
      %p171 = scmp.eq.s32.totalorder %s25, 0
      %p172 = por %p170, %p171
      %p173 = scmp.ne.s32.totalorder %s161, %s162
      %p174 = scmp.eq.s32.totalorder %s26, 1
      %p175 = por %p173, %p174
      %p177 = scmp.ne.s32.totalorder %s162, %s176
      %p178 = scmp.eq.s32.totalorder %s26, 0
      %p179 = por %p177, %p178
      %s181 = sadd.s32 %s180, 1
      %p184 = scmp.eq.s32.totalorder %s20, 1
      %p185 = scmp.ne.s32.totalorder %s180, %s182
      %p186 = scmp.eq.s32.totalorder %s20, 0
      %p187 = por %p185, %p186
      %p188 = scmp.ne.s32.totalorder %s180, %s182
      %p189 = scmp.eq.s32.totalorder %s25, 1
      %p190 = por %p188, %p189
      %p191 = scmp.ne.s32.totalorder %s182, %s183
      %p192 = scmp.eq.s32.totalorder %s25, 0
      %p193 = por %p191, %p192
      %p194 = scmp.ne.s32.totalorder %s182, %s183
      %p195 = scmp.eq.s32.totalorder %s26, 1
      %p196 = por %p194, %p195
      %p198 = scmp.ne.s32.totalorder %s183, %s197
      %p199 = scmp.eq.s32.totalorder %s26, 0
      %p200 = por %p198, %p199
      %s202 = sadd.s32 %s201, 1
      %p205 = scmp.eq.s32.totalorder %s20, 1
      %p206 = scmp.ne.s32.totalorder %s201, %s203
      %p207 = scmp.eq.s32.totalorder %s20, 0
      %p208 = por %p206, %p207
      %p209 = scmp.ne.s32.totalorder %s201, %s203
      %p210 = scmp.eq.s32.totalorder %s25, 1
      %p211 = por %p209, %p210
      %p212 = scmp.ne.s32.totalorder %s203, %s204
      %p213 = scmp.eq.s32.totalorder %s25, 0
      %p214 = por %p212, %p213
      %p215 = scmp.ne.s32.totalorder %s203, %s204
      %p216 = scmp.eq.s32.totalorder %s26, 1
      %p217 = por %p215, %p216
      %p219 = scmp.ne.s32.totalorder %s204, %s218
      %p220 = scmp.eq.s32.totalorder %s26, 0
      %p221 = por %p219, %p220
      %s223 = sadd.s32 %s222, 1
      %p226 = scmp.eq.s32.totalorder %s20, 1
      %p227 = scmp.ne.s32.totalorder %s222, %s224
      %p228 = scmp.eq.s32.totalorder %s20, 0
      %p229 = por %p227, %p228
      %p230 = scmp.ne.s32.totalorder %s222, %s224
      %p231 = scmp.eq.s32.totalorder %s25, 1
      %p232 = por %p230, %p231
      %p233 = scmp.ne.s32.totalorder %s224, %s225
      %p234 = scmp.eq.s32.totalorder %s25, 0
      %p235 = por %p233, %p234
      %p236 = scmp.ne.s32.totalorder %s224, %s225
      %p237 = scmp.eq.s32.totalorder %s26, 1
      %p238 = por %p236, %p237
      %p240 = scmp.ne.s32.totalorder %s225, %s239
      %p241 = scmp.eq.s32.totalorder %s26, 0
      %p242 = por %p240, %p241
      %s244 = sadd.s32 %s243, 1
      %p247 = scmp.eq.s32.totalorder %s20, 1
      %p248 = scmp.ne.s32.totalorder %s243, %s245
      %p249 = scmp.eq.s32.totalorder %s20, 0
      %p250 = por %p248, %p249
      %p251 = scmp.ne.s32.totalorder %s243, %s245
      %p252 = scmp.eq.s32.totalorder %s25, 1
      %p253 = por %p251, %p252
      %p254 = scmp.ne.s32.totalorder %s245, %s246
      %p255 = scmp.eq.s32.totalorder %s25, 0
      %p256 = por %p254, %p255
      %p257 = scmp.ne.s32.totalorder %s245, %s246
      %p258 = scmp.eq.s32.totalorder %s26, 1
      %p259 = por %p257, %p258
      %p261 = scmp.ne.s32.totalorder %s246, %s260
      %p262 = scmp.eq.s32.totalorder %s26, 0
      %p263 = por %p261, %p262
      %s264 = ssub.s32 %s20, %s27
      %p265 = scmp.eq.s32.totalorder %s264, 0
      %s267 = sadd.s32 %s266, 1
      %s268 = scalar_select %p265, %s266, %s267
      %p271 = pneg %p265
      %p272 = scmp.eq.s32.totalorder %s20, 1
      %p273 = por %p271, %p272
      %p274 = scmp.ne.s32.totalorder %s266, %s269
      %p275 = scmp.eq.s32.totalorder %s20, 0
      %p276 = por %p274, %p275
      %p277 = scmp.ne.s32.totalorder %s266, %s269
      %p278 = scmp.eq.s32.totalorder %s25, 1
      %p279 = por %p277, %p278
      %p280 = scmp.ne.s32.totalorder %s269, %s270
      %p281 = scmp.eq.s32.totalorder %s25, 0
      %p282 = por %p280, %p281
      %p283 = scmp.ne.s32.totalorder %s269, %s270
      %p284 = scmp.eq.s32.totalorder %s26, 1
      %p285 = por %p283, %p284
      %p287 = scmp.ne.s32.totalorder %s270, %s286
      %p288 = scmp.eq.s32.totalorder %s26, 0
      %p289 = por %p287, %p288
      %p290 = scmp.le.s32.totalorder 1, %s20
      %p291 = scmp.lt.s32.totalorder %s20, 3
      %p292 = pnand %p290, %p291
      %p293 = pneg %p292
      // Predicated region
      $region9: #{tpu_custom_call.1} parent=5 // pred_check
        _
      $region10: #{tpu_custom_call.1} parent=5 // pred_check_branch
        %295 = sbr.rel (%p292) target = $region12
      $region11: #{tpu_custom_call.1} parent=5 // pred_region
        %s296 = ssub.s32 %s20, 1
        // Predicated region
        $region13: #{tpu_custom_call.1} parent=11 // pred_check
          %p297 = pneg %p67
        $region14: #{tpu_custom_call.1} parent=11 // pred_check_branch
          %299 = sbr.rel (%p297) target = $region16
        $region15: #{tpu_custom_call.1} parent=11 // pred_region
          _
        $region16: #{tpu_custom_call.1} parent=11 // pred_fallthru
          _
        // Predicated region
        $region17: #{tpu_custom_call.1} parent=11 // pred_check
          %p300 = pneg %p88
        $region18: #{tpu_custom_call.1} parent=11 // pred_check_branch
          %302 = sbr.rel (%p300) target = $region20
        $region19: #{tpu_custom_call.1} parent=11 // pred_region
          _
        $region20: #{tpu_custom_call.1} parent=11 // pred_fallthru
          _
        // Predicated region
        $region21: #{tpu_custom_call.1} parent=11 // pred_check
          %p303 = pneg %p109
        $region22: #{tpu_custom_call.1} parent=11 // pred_check_branch
          %305 = sbr.rel (%p303) target = $region24
        $region23: #{tpu_custom_call.1} parent=11 // pred_region
          _
        $region24: #{tpu_custom_call.1} parent=11 // pred_fallthru
          _
        // Predicated region
        $region25: #{tpu_custom_call.1} parent=11 // pred_check
          %p306 = pneg %p130
        $region26: #{tpu_custom_call.1} parent=11 // pred_check_branch
          %308 = sbr.rel (%p306) target = $region28
        $region27: #{tpu_custom_call.1} parent=11 // pred_region
          _
        $region28: #{tpu_custom_call.1} parent=11 // pred_fallthru
          _
        // Predicated region
        $region29: #{tpu_custom_call.1} parent=11 // pred_check
          %p309 = pneg %p151
        $region30: #{tpu_custom_call.1} parent=11 // pred_check_branch
          %311 = sbr.rel (%p309) target = $region32
        $region31: #{tpu_custom_call.1} parent=11 // pred_region
          _
        $region32: #{tpu_custom_call.1} parent=11 // pred_fallthru
          _
        // Predicated region
        $region33: #{tpu_custom_call.1} parent=11 // pred_check
          %p312 = pneg %p172
        $region34: #{tpu_custom_call.1} parent=11 // pred_check_branch
          %314 = sbr.rel (%p312) target = $region36
        $region35: #{tpu_custom_call.1} parent=11 // pred_region
          _
        $region36: #{tpu_custom_call.1} parent=11 // pred_fallthru
          _
        // Predicated region
        $region37: #{tpu_custom_call.1} parent=11 // pred_check
          %p315 = pneg %p193
        $region38: #{tpu_custom_call.1} parent=11 // pred_check_branch
          %317 = sbr.rel (%p315) target = $region40
        $region39: #{tpu_custom_call.1} parent=11 // pred_region
          _
        $region40: #{tpu_custom_call.1} parent=11 // pred_fallthru
          _
        // Predicated region
        $region41: #{tpu_custom_call.1} parent=11 // pred_check
          %p318 = pneg %p214
        $region42: #{tpu_custom_call.1} parent=11 // pred_check_branch
          %320 = sbr.rel (%p318) target = $region44
        $region43: #{tpu_custom_call.1} parent=11 // pred_region
          _
        $region44: #{tpu_custom_call.1} parent=11 // pred_fallthru
          _
        // Predicated region
        $region45: #{tpu_custom_call.1} parent=11 // pred_check
          %p321 = pneg %p235
        $region46: #{tpu_custom_call.1} parent=11 // pred_check_branch
          %323 = sbr.rel (%p321) target = $region48
        $region47: #{tpu_custom_call.1} parent=11 // pred_region
          _
        $region48: #{tpu_custom_call.1} parent=11 // pred_fallthru
          _
        // Predicated region
        $region49: #{tpu_custom_call.1} parent=11 // pred_check
          %p324 = pneg %p256
        $region50: #{tpu_custom_call.1} parent=11 // pred_check_branch
          %326 = sbr.rel (%p324) target = $region52
        $region51: #{tpu_custom_call.1} parent=11 // pred_region
          _
        $region52: #{tpu_custom_call.1} parent=11 // pred_fallthru
          _
      $region12: #{tpu_custom_call.1} parent=5 // pred_fallthru
        _
      %p327 = scmp.lt.s32.totalorder %s20, 2
      // Predicated region
      $region53: #{tpu_custom_call.1} parent=5 // pred_check
        %p328 = pneg %p327
      $region54: #{tpu_custom_call.1} parent=5 // pred_check_branch
        %330 = sbr.rel (%p328) target = $region56
      $region55: #{tpu_custom_call.1} parent=5 // pred_region
        // Predicated region
        $region57: #{tpu_custom_call.1} parent=55 // pred_check
          %p331 = pneg %p40
        $region58: #{tpu_custom_call.1} parent=55 // pred_check_branch
          %333 = sbr.rel (%p331) target = $region60
        $region59: #{tpu_custom_call.1} parent=55 // pred_region
          %p334 = scmp.lt.s32.totalorder %s20, 1
          %s335 = scalar_select %p334, %s20, 1
          %s336 = smul.addr %s335, 8
          %s337 = scalar_lea.vmem %s0, %s336
        $region60: #{tpu_custom_call.1} parent=55 // pred_fallthru
          _
      $region56: #{tpu_custom_call.1} parent=5 // pred_fallthru
        _
      %p338 = scmp.le.s32.totalorder 1, %s20
      %p339 = scmp.lt.s32.totalorder %s20, 3
      %p340 = pnand %p338, %p339
      %p341 = pneg %p340
      // Predicated region
      $region61: #{tpu_custom_call.1} parent=5 // pred_check
        _
      $region62: #{tpu_custom_call.1} parent=5 // pred_check_branch
        %343 = sbr.rel (%p340) target = $region64
      $region63: #{tpu_custom_call.1} parent=5 // pred_region
        %s344 = ssub.s32 %s20, 1
        %p345 = scmp.lt.s32.totalorder %s25, 1
        %s346 = scalar_select %p345, %s25, 1
        %s347 = smul.addr %s346, 8
        %s348 = scalar_lea.vmem %s0, %s347
        %p349 = pneg %p46
        %p350 = pneg %p43
        %p351 = pneg %p67
        %p352 = pneg %p64
        %p353 = pneg %p88
        %p354 = pneg %p85
        %p355 = pneg %p109
        %p356 = pneg %p106
        %p357 = pneg %p130
        %p358 = pneg %p127
        %p359 = pneg %p151
        %p360 = pneg %p148
        %p361 = pneg %p172
        %p362 = pneg %p169
        %p363 = pneg %p193
        %p364 = pneg %p190
        %p365 = pneg %p214
        %p366 = pneg %p211
        %p367 = pneg %p235
        %p368 = pneg %p232
        %p369 = pneg %p256
        %p370 = pneg %p253
        %p371 = pneg %p282
        %p372 = pneg %p279
        %s373 = sand.u32 %s269, 1
        %s374 = scalar_lea.sflag [#allocation4], %s373
        %s375 = sand.u32 %s269, 1
        %s376 = smul.addr %s375, 8
        %s377 = scalar_lea.vmem [#allocation3], %s376
        %p378 = scmp.lt.s32.totalorder %s25, 1
        %s379 = scalar_select %p378, %s25, 1
        %s380 = smul.addr %s379, 8
        %s381 = scalar_lea.vmem %s0, %s380
        %v383 = vld [vmem:[%s381] sm:$0xff]
        %v384 = vpack.c.bf16 %v383, %v383
        %v385 = vld [vmem:[%s1] sm:$0xf]
        %v386 = vld [vmem:[%s1 + $0x4] sm:$0xf]
        %v387 = vld [vmem:[%s1 + $0x8] sm:$0xf]
        %v388 = vld [vmem:[%s1 + $0xc] sm:$0xf]
        %v389 = vld [vmem:[%s2] sm:$0x1]
        %v391 = vlaneseq
        %v392 = vshrl.u32 %v391, 7
        %v393 = vsub.s32 0, %v392
        %v394 = vrot.slane %v389, %v393
        %v400 = vunpack.c.l.b16 %v385
        %v401 = vunpack.c.l.b16 %v386
        %v402 = vunpack.c.l.b16 %v387
        %v403 = vunpack.c.l.b16 %v388
        %v404 = vpack.c.b16 %v401, %v400
        %v405 = vpack.c.b16 %v403, %v402
        %vm408 = vcmask 261120
        %v410 = vsel %vm408, %v384, 0
        %412 = vmatprep.subr.bf16.mxu0 0
        %413 = vmatpush1.bf16.msra.mxu0 %v404
        %414 = vmatprep.subr.bf16.mxu0 0
        %415 = vmatpush1.bf16.msra.mxu0 %v405
        %416 = vmatprep.subr.bf16.mxu0 0
        %417 = vmatpush1.bf16.msra.mxu0 0
        %418 = vmatprep.subr.bf16.mxu0 0
        %419 = vmatpush1.bf16.msra.mxu0 0
        %420 = vmatprep.subr.bf16.mxu0 0
        %421 = vmatpush1.bf16.msra.mxu0 0
        %422 = vmatprep.subr.bf16.mxu0 0
        %423 = vmatpush1.bf16.msra.mxu0 0
        %424 = vmatprep.subr.bf16.mxu0 0
        %425 = vmatpush1.bf16.msra.mxu0 0
        %426 = vmatprep.subr.bf16.mxu0 0
        %427 = vmatpush1.bf16.msra.mxu0 0
        %428 = vmatprep.subr.bf16.mxu0 0
        %429 = vmatpush1.bf16.msra.mxu0 0
        %430 = vmatprep.subr.bf16.mxu0 0
        %431 = vmatpush1.bf16.msra.mxu0 0
        %432 = vmatprep.subr.bf16.mxu0 0
        %433 = vmatpush1.bf16.msra.mxu0 0
        %434 = vmatprep.subr.bf16.mxu0 0
        %435 = vmatpush1.bf16.msra.mxu0 0
        %436 = vmatprep.subr.bf16.mxu0 0
        %437 = vmatpush1.bf16.msra.mxu0 0
        %438 = vmatprep.subr.bf16.mxu0 0
        %439 = vmatpush1.bf16.msra.mxu0 0
        %440 = vmatprep.subr.bf16.mxu0 0
        %441 = vmatpush1.bf16.msra.mxu0 0
        %442 = vmatprep.subr.bf16.mxu0 0
        %443 = vmatpush1.bf16.msra.mxu0 0
        %444 = vmatprep.mubr.bf16.mxu0 0
        %445 = vmatmul.mubr.bf16.gmra.mrb[0].mxu0 %v410
        %v446 = vpop.f32.mrb[0].mxu0
        %v447 = vadd.f32 %v394, %v446
        %v448 = vpop.f32.mrb[0].mxu0
        %v449 = vpop.f32.mrb[0].mxu0
        %v450 = vpop.f32.mrb[0].mxu0
        %451 = vdwg.mxu0
        %v452 = vpack.c.bf16 %v447, %v447
        %454 = vrot.lane.b32.xlu0 %v452, 96
        %v455 = vpop.permute.xlu0 %454
        %vm456 = vcmask 64512
        %v458 = vsel %vm456, %v452, 0
        %v461 = vsel %vm456, %v455, 0
        %463 = vmatprep.subr.bf16.mxu0 0
        %464 = vmatpush1.bf16.xpose.msra.mxu0 %v461
        %465 = vmatprep.subr.bf16.mxu0 0
        %466 = vmatpush1.bf16.xpose.msra.mxu0 0
        %467 = vmatprep.subr.bf16.mxu0 0
        %468 = vmatpush1.bf16.xpose.msra.mxu0 0
        %469 = vmatprep.subr.bf16.mxu0 0
        %470 = vmatpush1.bf16.xpose.msra.mxu0 0
        %471 = vmatprep.subr.bf16.mxu0 0
        %472 = vmatpush1.bf16.xpose.msra.mxu0 0
        %473 = vmatprep.subr.bf16.mxu0 0
        %474 = vmatpush1.bf16.xpose.msra.mxu0 0
        %475 = vmatprep.subr.bf16.mxu0 0
        %476 = vmatpush1.bf16.xpose.msra.mxu0 0
        %477 = vmatprep.subr.bf16.mxu0 0
        %478 = vmatpush1.bf16.xpose.msra.mxu0 0
        %479 = vmatprep.subr.bf16.mxu0 0
        %480 = vmatpush1.bf16.xpose.msra.mxu0 0
        %481 = vmatprep.subr.bf16.mxu0 0
        %482 = vmatpush1.bf16.xpose.msra.mxu0 0
        %483 = vmatprep.subr.bf16.mxu0 0
        %484 = vmatpush1.bf16.xpose.msra.mxu0 0
        %485 = vmatprep.subr.bf16.mxu0 0
        %486 = vmatpush1.bf16.xpose.msra.mxu0 0
        %487 = vmatprep.subr.bf16.mxu0 0
        %488 = vmatpush1.bf16.xpose.msra.mxu0 0
        %489 = vmatprep.subr.bf16.mxu0 0
        %490 = vmatpush1.bf16.xpose.msra.mxu0 0
        %491 = vmatprep.subr.bf16.mxu0 0
        %492 = vmatpush1.bf16.xpose.msra.mxu0 0
        %493 = vmatprep.subr.bf16.mxu0 0
        %494 = vmatpush1.bf16.xpose.msra.mxu0 0
        %495 = vmatprep.mubr.bf16.mxu0 0
        %496 = vmatmul.mubr.bf16.gmra.mrb[0].mxu0 %v458
        %v497 = vpop.f32.mrb[0].mxu0
        %v498 = vadd.f32 0.0, %v497
        %v499 = vpop.f32.mrb[0].mxu0
        %v500 = vpop.f32.mrb[0].mxu0
        %v501 = vpop.f32.mrb[0].mxu0
        %502 = vdwg.mxu0
        %v503 = vsel %vm456, %v498, -inf
        %504 = vmax.xlane.f32.xlu0 %v503
        %v505 = vpop.xlane.xlu0 %504
        %v506 = vsub.f32 %v498, %v505
        %v507 = vmul.f32 %v506, 1.442695
        %v508 = vpow.pop %v507
        %v509 = vsel %vm456, %v508, 0.0
        %510 = vadd.xlane.f32.xlu0 %v509
        %v511 = vpop.xlane.xlu0 %510
        %v512 = vrcp.pop %v511
        %v513 = vmul.f32 %v508, %v512
        %v514 = vpack.c.bf16 %v513, %v513
        %515 = vrot.lane.b32.xlu0 %v452, 64
        %v516 = vpop.permute.xlu0 %515
        %v518 = vsel %vm456, %v514, 0
        %vm520 = vcmask 1043456
        %v522 = vsel %vm520, %v516, 0
        %524 = vmatprep.subr.bf16.mxu0 0
        %525 = vmatpush1.bf16.msra.mxu0 %v522
        %526 = vmatprep.subr.bf16.mxu0 0
        %527 = vmatpush1.bf16.msra.mxu0 0
        %528 = vmatprep.subr.bf16.mxu0 0
        %529 = vmatpush1.bf16.msra.mxu0 0
        %530 = vmatprep.subr.bf16.mxu0 0
        %531 = vmatpush1.bf16.msra.mxu0 0
        %532 = vmatprep.subr.bf16.mxu0 0
        %533 = vmatpush1.bf16.msra.mxu0 0
        %534 = vmatprep.subr.bf16.mxu0 0
        %535 = vmatpush1.bf16.msra.mxu0 0
        %536 = vmatprep.subr.bf16.mxu0 0
        %537 = vmatpush1.bf16.msra.mxu0 0
        %538 = vmatprep.subr.bf16.mxu0 0
        %539 = vmatpush1.bf16.msra.mxu0 0
        %540 = vmatprep.subr.bf16.mxu0 0
        %541 = vmatpush1.bf16.msra.mxu0 0
        %542 = vmatprep.subr.bf16.mxu0 0
        %543 = vmatpush1.bf16.msra.mxu0 0
        %544 = vmatprep.subr.bf16.mxu0 0
        %545 = vmatpush1.bf16.msra.mxu0 0
        %546 = vmatprep.subr.bf16.mxu0 0
        %547 = vmatpush1.bf16.msra.mxu0 0
        %548 = vmatprep.subr.bf16.mxu0 0
        %549 = vmatpush1.bf16.msra.mxu0 0
        %550 = vmatprep.subr.bf16.mxu0 0
        %551 = vmatpush1.bf16.msra.mxu0 0
        %552 = vmatprep.subr.bf16.mxu0 0
        %553 = vmatpush1.bf16.msra.mxu0 0
        %554 = vmatprep.subr.bf16.mxu0 0
        %555 = vmatpush1.bf16.msra.mxu0 0
        %556 = vmatprep.mubr.bf16.mxu0 0
        %557 = vmatmul.mubr.bf16.gmra.mrb[0].mxu0 %v518
        %v558 = vpop.f32.mrb[0].mxu0
        %v559 = vadd.f32 0.0, %v558
        %v560 = vpop.f32.mrb[0].mxu0
        %v561 = vpop.f32.mrb[0].mxu0
        %v562 = vpop.f32.mrb[0].mxu0
        %563 = vdwg.mxu0
        %564 = vst.msk [vmem:[#allocation2] sm:$0xff] %vm456, %v559
        %565 = vrot.lane.b32.xlu0 %v452, 120
        %v566 = vpop.permute.xlu0 %565
        %567 = vrot.lane.b32.xlu0 %v452, 88
        %v568 = vpop.permute.xlu0 %567
        %v570 = vsel %vm456, %v566, 0
        %v573 = vsel %vm456, %v568, 0
        %575 = vmatprep.subr.bf16.mxu0 0
        %576 = vmatpush1.bf16.xpose.msra.mxu0 %v573
        %577 = vmatprep.subr.bf16.mxu0 0
        %578 = vmatpush1.bf16.xpose.msra.mxu0 0
        %579 = vmatprep.subr.bf16.mxu0 0
        %580 = vmatpush1.bf16.xpose.msra.mxu0 0
        %581 = vmatprep.subr.bf16.mxu0 0
        %582 = vmatpush1.bf16.xpose.msra.mxu0 0
        %583 = vmatprep.subr.bf16.mxu0 0
        %584 = vmatpush1.bf16.xpose.msra.mxu0 0
        %585 = vmatprep.subr.bf16.mxu0 0
        %586 = vmatpush1.bf16.xpose.msra.mxu0 0
        %587 = vmatprep.subr.bf16.mxu0 0
        %588 = vmatpush1.bf16.xpose.msra.mxu0 0
        %589 = vmatprep.subr.bf16.mxu0 0
        %590 = vmatpush1.bf16.xpose.msra.mxu0 0
        %591 = vmatprep.subr.bf16.mxu0 0
        %592 = vmatpush1.bf16.xpose.msra.mxu0 0
        %593 = vmatprep.subr.bf16.mxu0 0
        %594 = vmatpush1.bf16.xpose.msra.mxu0 0
        %595 = vmatprep.subr.bf16.mxu0 0
        %596 = vmatpush1.bf16.xpose.msra.mxu0 0
        %597 = vmatprep.subr.bf16.mxu0 0
        %598 = vmatpush1.bf16.xpose.msra.mxu0 0
        %599 = vmatprep.subr.bf16.mxu0 0
        %600 = vmatpush1.bf16.xpose.msra.mxu0 0
        %601 = vmatprep.subr.bf16.mxu0 0
        %602 = vmatpush1.bf16.xpose.msra.mxu0 0
        %603 = vmatprep.subr.bf16.mxu0 0
        %604 = vmatpush1.bf16.xpose.msra.mxu0 0
        %605 = vmatprep.subr.bf16.mxu0 0
        %606 = vmatpush1.bf16.xpose.msra.mxu0 0
        %607 = vmatprep.mubr.bf16.mxu0 0
        %608 = vmatmul.mubr.bf16.gmra.mrb[0].mxu0 %v570
        %v609 = vpop.f32.mrb[0].mxu0
        %v610 = vadd.f32 0.0, %v609
        %v611 = vpop.f32.mrb[0].mxu0
        %v612 = vpop.f32.mrb[0].mxu0
        %v613 = vpop.f32.mrb[0].mxu0
        %614 = vdwg.mxu0
        %v615 = vsel %vm456, %v610, -inf
        %616 = vmax.xlane.f32.xlu0 %v615
        %v617 = vpop.xlane.xlu0 %616
        %v618 = vsub.f32 %v610, %v617
        %v619 = vmul.f32 %v618, 1.442695
        %v620 = vpow.pop %v619
        %v621 = vsel %vm456, %v620, 0.0
        %622 = vadd.xlane.f32.xlu0 %v621
        %v623 = vpop.xlane.xlu0 %622
        %v624 = vrcp.pop %v623
        %v625 = vmul.f32 %v620, %v624
        %v626 = vpack.c.bf16 %v625, %v625
        %627 = vrot.lane.b32.xlu0 %v452, 56
        %v628 = vpop.permute.xlu0 %627
        %v630 = vsel %vm456, %v626, 0
        %v633 = vsel %vm520, %v628, 0
        %635 = vmatprep.subr.bf16.mxu0 0
        %636 = vmatpush1.bf16.msra.mxu0 %v633
        %637 = vmatprep.subr.bf16.mxu0 0
        %638 = vmatpush1.bf16.msra.mxu0 0
        %639 = vmatprep.subr.bf16.mxu0 0
        %640 = vmatpush1.bf16.msra.mxu0 0
        %641 = vmatprep.subr.bf16.mxu0 0
        %642 = vmatpush1.bf16.msra.mxu0 0
        %643 = vmatprep.subr.bf16.mxu0 0
        %644 = vmatpush1.bf16.msra.mxu0 0
        %645 = vmatprep.subr.bf16.mxu0 0
        %646 = vmatpush1.bf16.msra.mxu0 0
        %647 = vmatprep.subr.bf16.mxu0 0
        %648 = vmatpush1.bf16.msra.mxu0 0
        %649 = vmatprep.subr.bf16.mxu0 0
        %650 = vmatpush1.bf16.msra.mxu0 0
        %651 = vmatprep.subr.bf16.mxu0 0
        %652 = vmatpush1.bf16.msra.mxu0 0
        %653 = vmatprep.subr.bf16.mxu0 0
        %654 = vmatpush1.bf16.msra.mxu0 0
        %655 = vmatprep.subr.bf16.mxu0 0
        %656 = vmatpush1.bf16.msra.mxu0 0
        %657 = vmatprep.subr.bf16.mxu0 0
        %658 = vmatpush1.bf16.msra.mxu0 0
        %659 = vmatprep.subr.bf16.mxu0 0
        %660 = vmatpush1.bf16.msra.mxu0 0
        %661 = vmatprep.subr.bf16.mxu0 0
        %662 = vmatpush1.bf16.msra.mxu0 0
        %663 = vmatprep.subr.bf16.mxu0 0
        %664 = vmatpush1.bf16.msra.mxu0 0
        %665 = vmatprep.subr.bf16.mxu0 0
        %666 = vmatpush1.bf16.msra.mxu0 0
        %667 = vmatprep.mubr.bf16.mxu0 0
        %668 = vmatmul.mubr.bf16.gmra.mrb[0].mxu0 %v630
        %v669 = vpop.f32.mrb[0].mxu0
        %v670 = vadd.f32 0.0, %v669
        %v671 = vpop.f32.mrb[0].mxu0
        %v672 = vpop.f32.mrb[0].mxu0
        %v673 = vpop.f32.mrb[0].mxu0
        %674 = vdwg.mxu0
        %676 = vrot.lane.b32.xlu0 %v670, 8
        %v677 = vpop.permute.xlu0 %676
        %vm679 = vcmask 130112
        %680 = vst.msk [vmem:[#allocation2] sm:$0xff] %vm679, %v677
        %681 = vrot.lane.b32.xlu0 %v452, 112
        %v682 = vpop.permute.xlu0 %681
        %683 = vrot.lane.b32.xlu0 %v452, 80
        %v684 = vpop.permute.xlu0 %683
        %v686 = vsel %vm456, %v682, 0
        %v689 = vsel %vm456, %v684, 0
        %691 = vmatprep.subr.bf16.mxu0 0
        %692 = vmatpush1.bf16.xpose.msra.mxu0 %v689
        %693 = vmatprep.subr.bf16.mxu0 0
        %694 = vmatpush1.bf16.xpose.msra.mxu0 0
        %695 = vmatprep.subr.bf16.mxu0 0
        %696 = vmatpush1.bf16.xpose.msra.mxu0 0
        %697 = vmatprep.subr.bf16.mxu0 0
        %698 = vmatpush1.bf16.xpose.msra.mxu0 0
        %699 = vmatprep.subr.bf16.mxu0 0
        %700 = vmatpush1.bf16.xpose.msra.mxu0 0
        %701 = vmatprep.subr.bf16.mxu0 0
        %702 = vmatpush1.bf16.xpose.msra.mxu0 0
        %703 = vmatprep.subr.bf16.mxu0 0
        %704 = vmatpush1.bf16.xpose.msra.mxu0 0
        %705 = vmatprep.subr.bf16.mxu0 0
        %706 = vmatpush1.bf16.xpose.msra.mxu0 0
        %707 = vmatprep.subr.bf16.mxu0 0
        %708 = vmatpush1.bf16.xpose.msra.mxu0 0
        %709 = vmatprep.subr.bf16.mxu0 0
        %710 = vmatpush1.bf16.xpose.msra.mxu0 0
        %711 = vmatprep.subr.bf16.mxu0 0
        %712 = vmatpush1.bf16.xpose.msra.mxu0 0
        %713 = vmatprep.subr.bf16.mxu0 0
        %714 = vmatpush1.bf16.xpose.msra.mxu0 0
        %715 = vmatprep.subr.bf16.mxu0 0
        %716 = vmatpush1.bf16.xpose.msra.mxu0 0
        %717 = vmatprep.subr.bf16.mxu0 0
        %718 = vmatpush1.bf16.xpose.msra.mxu0 0
        %719 = vmatprep.subr.bf16.mxu0 0
        %720 = vmatpush1.bf16.xpose.msra.mxu0 0
        %721 = vmatprep.subr.bf16.mxu0 0
        %722 = vmatpush1.bf16.xpose.msra.mxu0 0
        %723 = vmatprep.mubr.bf16.mxu0 0
        %724 = vmatmul.mubr.bf16.gmra.mrb[0].mxu0 %v686
        %v725 = vpop.f32.mrb[0].mxu0
        %v726 = vadd.f32 0.0, %v725
        %v727 = vpop.f32.mrb[0].mxu0
        %v728 = vpop.f32.mrb[0].mxu0
        %v729 = vpop.f32.mrb[0].mxu0
        %730 = vdwg.mxu0
        %v731 = vsel %vm456, %v726, -inf
        %732 = vmax.xlane.f32.xlu0 %v731
        %v733 = vpop.xlane.xlu0 %732
        %v734 = vsub.f32 %v726, %v733
        %v735 = vmul.f32 %v734, 1.442695
        %v736 = vpow.pop %v735
        %v737 = vsel %vm456, %v736, 0.0
        %738 = vadd.xlane.f32.xlu0 %v737
        %v739 = vpop.xlane.xlu0 %738
        %v740 = vrcp.pop %v739
        %v741 = vmul.f32 %v736, %v740
        %v742 = vpack.c.bf16 %v741, %v741
        %743 = vrot.lane.b32.xlu0 %v452, 48
        %v744 = vpop.permute.xlu0 %743
        %v746 = vsel %vm456, %v742, 0
        %v749 = vsel %vm520, %v744, 0
        %751 = vmatprep.subr.bf16.mxu0 0
        %752 = vmatpush1.bf16.msra.mxu0 %v749
        %753 = vmatprep.subr.bf16.mxu0 0
        %754 = vmatpush1.bf16.msra.mxu0 0
        %755 = vmatprep.subr.bf16.mxu0 0
        %756 = vmatpush1.bf16.msra.mxu0 0
        %757 = vmatprep.subr.bf16.mxu0 0
        %758 = vmatpush1.bf16.msra.mxu0 0
        %759 = vmatprep.subr.bf16.mxu0 0
        %760 = vmatpush1.bf16.msra.mxu0 0
        %761 = vmatprep.subr.bf16.mxu0 0
        %762 = vmatpush1.bf16.msra.mxu0 0
        %763 = vmatprep.subr.bf16.mxu0 0
        %764 = vmatpush1.bf16.msra.mxu0 0
        %765 = vmatprep.subr.bf16.mxu0 0
        %766 = vmatpush1.bf16.msra.mxu0 0
        %767 = vmatprep.subr.bf16.mxu0 0
        %768 = vmatpush1.bf16.msra.mxu0 0
        %769 = vmatprep.subr.bf16.mxu0 0
        %770 = vmatpush1.bf16.msra.mxu0 0
        %771 = vmatprep.subr.bf16.mxu0 0
        %772 = vmatpush1.bf16.msra.mxu0 0
        %773 = vmatprep.subr.bf16.mxu0 0
        %774 = vmatpush1.bf16.msra.mxu0 0
        %775 = vmatprep.subr.bf16.mxu0 0
        %776 = vmatpush1.bf16.msra.mxu0 0
        %777 = vmatprep.subr.bf16.mxu0 0
        %778 = vmatpush1.bf16.msra.mxu0 0
        %779 = vmatprep.subr.bf16.mxu0 0
        %780 = vmatpush1.bf16.msra.mxu0 0
        %781 = vmatprep.subr.bf16.mxu0 0
        %782 = vmatpush1.bf16.msra.mxu0 0
        %783 = vmatprep.mubr.bf16.mxu0 0
        %784 = vmatmul.mubr.bf16.gmra.mrb[0].mxu0 %v746
        %v785 = vpop.f32.mrb[0].mxu0
        %v786 = vadd.f32 0.0, %v785
        %v787 = vpop.f32.mrb[0].mxu0
        %v788 = vpop.f32.mrb[0].mxu0
        %v789 = vpop.f32.mrb[0].mxu0
        %790 = vdwg.mxu0
        %792 = vrot.lane.b32.xlu0 %v786, 16
        %v793 = vpop.permute.xlu0 %792
        %vm795 = vcmask 195712
        %796 = vst.msk [vmem:[#allocation2] sm:$0xff] %vm795, %v793
        %797 = vrot.lane.b32.xlu0 %v452, 104
        %v798 = vpop.permute.xlu0 %797
        %799 = vrot.lane.b32.xlu0 %v452, 72
        %v800 = vpop.permute.xlu0 %799
        %v802 = vsel %vm456, %v798, 0
        %v805 = vsel %vm456, %v800, 0
        %807 = vmatprep.subr.bf16.mxu0 0
        %808 = vmatpush1.bf16.xpose.msra.mxu0 %v805
        %809 = vmatprep.subr.bf16.mxu0 0
        %810 = vmatpush1.bf16.xpose.msra.mxu0 0
        %811 = vmatprep.subr.bf16.mxu0 0
        %812 = vmatpush1.bf16.xpose.msra.mxu0 0
        %813 = vmatprep.subr.bf16.mxu0 0
        %814 = vmatpush1.bf16.xpose.msra.mxu0 0
        %815 = vmatprep.subr.bf16.mxu0 0
        %816 = vmatpush1.bf16.xpose.msra.mxu0 0
        %817 = vmatprep.subr.bf16.mxu0 0
        %818 = vmatpush1.bf16.xpose.msra.mxu0 0
        %819 = vmatprep.subr.bf16.mxu0 0
        %820 = vmatpush1.bf16.xpose.msra.mxu0 0
        %821 = vmatprep.subr.bf16.mxu0 0
        %822 = vmatpush1.bf16.xpose.msra.mxu0 0
        %823 = vmatprep.subr.bf16.mxu0 0
        %824 = vmatpush1.bf16.xpose.msra.mxu0 0
        %825 = vmatprep.subr.bf16.mxu0 0
        %826 = vmatpush1.bf16.xpose.msra.mxu0 0
        %827 = vmatprep.subr.bf16.mxu0 0
        %828 = vmatpush1.bf16.xpose.msra.mxu0 0
        %829 = vmatprep.subr.bf16.mxu0 0
        %830 = vmatpush1.bf16.xpose.msra.mxu0 0
        %831 = vmatprep.subr.bf16.mxu0 0
        %832 = vmatpush1.bf16.xpose.msra.mxu0 0
        %833 = vmatprep.subr.bf16.mxu0 0
        %834 = vmatpush1.bf16.xpose.msra.mxu0 0
        %835 = vmatprep.subr.bf16.mxu0 0
        %836 = vmatpush1.bf16.xpose.msra.mxu0 0
        %837 = vmatprep.subr.bf16.mxu0 0
        %838 = vmatpush1.bf16.xpose.msra.mxu0 0
        %839 = vmatprep.mubr.bf16.mxu0 0
        %840 = vmatmul.mubr.bf16.gmra.mrb[0].mxu0 %v802
        %v841 = vpop.f32.mrb[0].mxu0
        %v842 = vadd.f32 0.0, %v841
        %v843 = vpop.f32.mrb[0].mxu0
        %v844 = vpop.f32.mrb[0].mxu0
        %v845 = vpop.f32.mrb[0].mxu0
        %846 = vdwg.mxu0
        %v847 = vsel %vm456, %v842, -inf
        %848 = vmax.xlane.f32.xlu0 %v847
        %v849 = vpop.xlane.xlu0 %848
        %v850 = vsub.f32 %v842, %v849
        %v851 = vmul.f32 %v850, 1.442695
        %v852 = vpow.pop %v851
        %v853 = vsel %vm456, %v852, 0.0
        %854 = vadd.xlane.f32.xlu0 %v853
        %v855 = vpop.xlane.xlu0 %854
        %v856 = vrcp.pop %v855
        %v857 = vmul.f32 %v852, %v856
        %v858 = vpack.c.bf16 %v857, %v857
        %859 = vrot.lane.b32.xlu0 %v452, 40
        %v860 = vpop.permute.xlu0 %859
        %v862 = vsel %vm456, %v858, 0
        %v865 = vsel %vm520, %v860, 0
        %867 = vmatprep.subr.bf16.mxu0 0
        %868 = vmatpush1.bf16.msra.mxu0 %v865
        %869 = vmatprep.subr.bf16.mxu0 0
        %870 = vmatpush1.bf16.msra.mxu0 0
        %871 = vmatprep.subr.bf16.mxu0 0
        %872 = vmatpush1.bf16.msra.mxu0 0
        %873 = vmatprep.subr.bf16.mxu0 0
        %874 = vmatpush1.bf16.msra.mxu0 0
        %875 = vmatprep.subr.bf16.mxu0 0
        %876 = vmatpush1.bf16.msra.mxu0 0
        %877 = vmatprep.subr.bf16.mxu0 0
        %878 = vmatpush1.bf16.msra.mxu0 0
        %879 = vmatprep.subr.bf16.mxu0 0
        %880 = vmatpush1.bf16.msra.mxu0 0
        %881 = vmatprep.subr.bf16.mxu0 0
        %882 = vmatpush1.bf16.msra.mxu0 0
        %883 = vmatprep.subr.bf16.mxu0 0
        %884 = vmatpush1.bf16.msra.mxu0 0
        %885 = vmatprep.subr.bf16.mxu0 0
        %886 = vmatpush1.bf16.msra.mxu0 0
        %887 = vmatprep.subr.bf16.mxu0 0
        %888 = vmatpush1.bf16.msra.mxu0 0
        %889 = vmatprep.subr.bf16.mxu0 0
        %890 = vmatpush1.bf16.msra.mxu0 0
        %891 = vmatprep.subr.bf16.mxu0 0
        %892 = vmatpush1.bf16.msra.mxu0 0
        %893 = vmatprep.subr.bf16.mxu0 0
        %894 = vmatpush1.bf16.msra.mxu0 0
        %895 = vmatprep.subr.bf16.mxu0 0
        %896 = vmatpush1.bf16.msra.mxu0 0
        %897 = vmatprep.subr.bf16.mxu0 0
        %898 = vmatpush1.bf16.msra.mxu0 0
        %899 = vmatprep.mubr.bf16.mxu0 0
        %900 = vmatmul.mubr.bf16.gmra.mrb[0].mxu0 %v862
        %v901 = vpop.f32.mrb[0].mxu0
        %v902 = vadd.f32 0.0, %v901
        %v903 = vpop.f32.mrb[0].mxu0
        %v904 = vpop.f32.mrb[0].mxu0
        %v905 = vpop.f32.mrb[0].mxu0
        %906 = vdwg.mxu0
        %908 = vrot.lane.b32.xlu0 %v902, 24
        %v909 = vpop.permute.xlu0 %908
        %vm911 = vcmask 261312
        %912 = vst.msk [vmem:[#allocation2] sm:$0xff] %vm911, %v909
        %v913 = vld [vmem:[#allocation2] sm:$0xff]
        %v914 = vadd.f32 %v383, %v913
        %v915 = vld [vmem:[%s3] sm:$0x1]
        %v916 = vld [vmem:[%s4] sm:$0x1]
        %v917 = vsel %vm408, %v914, 0.0
        %918 = vadd.xlane.f32.xlu0 %v917
        %v919 = vpop.xlane.xlu0 %918
        %v920 = vrcp.pop 32.0
        %v921 = vmul.f32 %v919, %v920
        %v922 = vmul.f32 %v914, %v914
        %v923 = vsel %vm408, %v922, 0.0
        %924 = vadd.xlane.f32.xlu0 %v923
        %v925 = vpop.xlane.xlu0 %924
        %v926 = vmul.f32 %v925, %v920
        %v927 = vmul.f32 %v921, %v921
        %v928 = vsub.f32 %v926, %v927
        %v929 = vadd.f32 %v928, 1e-05
        %v930 = vrsqrt.pop %v929
        %v931 = vsub.f32 %v914, %v921
        %v932 = vmul.f32 %v931, %v930
        %v934 = vlaneseq
        %v935 = vshrl.u32 %v934, 7
        %v936 = vsub.s32 0, %v935
        %v937 = vrot.slane %v915, %v936
        %v939 = vmul.f32 %v932, %v937
        %v941 = vlaneseq
        %v942 = vshrl.u32 %v941, 7
        %v943 = vsub.s32 0, %v942
        %v944 = vrot.slane %v916, %v943
        %v946 = vadd.f32 %v939, %v944
        %v947 = vpack.c.bf16 %v946, %v946
        %v948 = vld [vmem:[%s5] sm:$0xf]
        %v949 = vld [vmem:[%s5 + $0x4] sm:$0xf]
        %v950 = vld [vmem:[%s5 + $0x8] sm:$0xf]
        %v951 = vld [vmem:[%s5 + $0xc] sm:$0xf]
        %v952 = vld [vmem:[%s6] sm:$0x1]
        %v954 = vlaneseq
        %v955 = vshrl.u32 %v954, 7
        %v956 = vsub.s32 0, %v955
        %v957 = vrot.slane %v952, %v956
        %v963 = vunpack.c.l.b16 %v948
        %v964 = vunpack.c.l.b16 %v949
        %v965 = vunpack.c.l.b16 %v950
        %v966 = vunpack.c.l.b16 %v951
        %v967 = vpack.c.b16 %v964, %v963
        %v968 = vpack.c.b16 %v966, %v965
        %v972 = vsel %vm408, %v947, 0
        %974 = vmatprep.subr.bf16.mxu0 0
        %975 = vmatpush1.bf16.msra.mxu0 %v967
        %976 = vmatprep.subr.bf16.mxu0 0
        %977 = vmatpush1.bf16.msra.mxu0 %v968
        %978 = vmatprep.subr.bf16.mxu0 0
        %979 = vmatpush1.bf16.msra.mxu0 0
        %980 = vmatprep.subr.bf16.mxu0 0
        %981 = vmatpush1.bf16.msra.mxu0 0
        %982 = vmatprep.subr.bf16.mxu0 0
        %983 = vmatpush1.bf16.msra.mxu0 0
        %984 = vmatprep.subr.bf16.mxu0 0
        %985 = vmatpush1.bf16.msra.mxu0 0
        %986 = vmatprep.subr.bf16.mxu0 0
        %987 = vmatpush1.bf16.msra.mxu0 0
        %988 = vmatprep.subr.bf16.mxu0 0
        %989 = vmatpush1.bf16.msra.mxu0 0
        %990 = vmatprep.subr.bf16.mxu0 0
        %991 = vmatpush1.bf16.msra.mxu0 0
        %992 = vmatprep.subr.bf16.mxu0 0
        %993 = vmatpush1.bf16.msra.mxu0 0
        %994 = vmatprep.subr.bf16.mxu0 0
        %995 = vmatpush1.bf16.msra.mxu0 0
        %996 = vmatprep.subr.bf16.mxu0 0
        %997 = vmatpush1.bf16.msra.mxu0 0
        %998 = vmatprep.subr.bf16.mxu0 0
        %999 = vmatpush1.bf16.msra.mxu0 0
        %1000 = vmatprep.subr.bf16.mxu0 0
        %1001 = vmatpush1.bf16.msra.mxu0 0
        %1002 = vmatprep.subr.bf16.mxu0 0
        %1003 = vmatpush1.bf16.msra.mxu0 0
        %1004 = vmatprep.subr.bf16.mxu0 0
        %1005 = vmatpush1.bf16.msra.mxu0 0
        %1006 = vmatprep.mubr.bf16.mxu0 0
        %1007 = vmatmul.mubr.bf16.gmra.mrb[0].mxu0 %v972
        %v1008 = vpop.f32.mrb[0].mxu0
        %v1009 = vadd.f32 %v957, %v1008
        %v1010 = vpop.f32.mrb[0].mxu0
        %v1011 = vpop.f32.mrb[0].mxu0
        %v1012 = vpop.f32.mrb[0].mxu0
        %1013 = vdwg.mxu0
        %v1014 = vmax.f32 %v1009, 0.0
        %v1015 = vpack.c.bf16 %v1014, %v1014
        %v1016 = vld [vmem:[%s7] sm:$0xf]
        %v1017 = vld [vmem:[%s7 + $0x4] sm:$0xf]
        %v1018 = vld [vmem:[%s7 + $0x8] sm:$0xf]
        %v1019 = vld [vmem:[%s7 + $0xc] sm:$0xf]
        %v1020 = vld [vmem:[%s7 + $0x10] sm:$0xf]
        %v1021 = vld [vmem:[%s7 + $0x14] sm:$0xf]
        %v1022 = vld [vmem:[%s7 + $0x18] sm:$0xf]
        %v1023 = vld [vmem:[%s7 + $0x1c] sm:$0xf]
        %v1024 = vld [vmem:[%s8] sm:$0x1]
        %v1026 = vlaneseq
        %v1027 = vshrl.u32 %v1026, 7
        %v1028 = vsub.s32 0, %v1027
        %v1029 = vrot.slane %v1024, %v1028
        %v1039 = vunpack.c.l.b16 %v1016
        %v1040 = vunpack.c.l.b16 %v1017
        %v1041 = vunpack.c.l.b16 %v1018
        %v1042 = vunpack.c.l.b16 %v1019
        %v1043 = vunpack.c.l.b16 %v1020
        %v1044 = vunpack.c.l.b16 %v1021
        %v1045 = vunpack.c.l.b16 %v1022
        %v1046 = vunpack.c.l.b16 %v1023
        %v1047 = vpack.c.b16 %v1040, %v1039
        %v1048 = vpack.c.b16 %v1042, %v1041
        %v1049 = vpack.c.b16 %v1044, %v1043
        %v1050 = vpack.c.b16 %v1046, %v1045
        %vm1055 = vcmask 523264
        %v1057 = vsel %vm1055, %v1015, 0
        %1059 = vmatprep.subr.bf16.mxu0 0
        %1060 = vmatpush1.bf16.msra.mxu0 %v1047
        %1061 = vmatprep.subr.bf16.mxu0 0
        %1062 = vmatpush1.bf16.msra.mxu0 %v1048
        %1063 = vmatprep.subr.bf16.mxu0 0
        %1064 = vmatpush1.bf16.msra.mxu0 %v1049
        %1065 = vmatprep.subr.bf16.mxu0 0
        %1066 = vmatpush1.bf16.msra.mxu0 %v1050
        %1067 = vmatprep.subr.bf16.mxu0 0
        %1068 = vmatpush1.bf16.msra.mxu0 0
        %1069 = vmatprep.subr.bf16.mxu0 0
        %1070 = vmatpush1.bf16.msra.mxu0 0
        %1071 = vmatprep.subr.bf16.mxu0 0
        %1072 = vmatpush1.bf16.msra.mxu0 0
        %1073 = vmatprep.subr.bf16.mxu0 0
        %1074 = vmatpush1.bf16.msra.mxu0 0
        %1075 = vmatprep.subr.bf16.mxu0 0
        %1076 = vmatpush1.bf16.msra.mxu0 0
        %1077 = vmatprep.subr.bf16.mxu0 0
        %1078 = vmatpush1.bf16.msra.mxu0 0
        %1079 = vmatprep.subr.bf16.mxu0 0
        %1080 = vmatpush1.bf16.msra.mxu0 0
        %1081 = vmatprep.subr.bf16.mxu0 0
        %1082 = vmatpush1.bf16.msra.mxu0 0
        %1083 = vmatprep.subr.bf16.mxu0 0
        %1084 = vmatpush1.bf16.msra.mxu0 0
        %1085 = vmatprep.subr.bf16.mxu0 0
        %1086 = vmatpush1.bf16.msra.mxu0 0
        %1087 = vmatprep.subr.bf16.mxu0 0
        %1088 = vmatpush1.bf16.msra.mxu0 0
        %1089 = vmatprep.subr.bf16.mxu0 0
        %1090 = vmatpush1.bf16.msra.mxu0 0
        %1091 = vmatprep.mubr.bf16.mxu0 0
        %1092 = vmatmul.mubr.bf16.gmra.mrb[0].mxu0 %v1057
        %v1093 = vpop.f32.mrb[0].mxu0
        %v1094 = vadd.f32 %v1029, %v1093
        %v1095 = vpop.f32.mrb[0].mxu0
        %v1096 = vpop.f32.mrb[0].mxu0
        %v1097 = vpop.f32.mrb[0].mxu0
        %1098 = vdwg.mxu0
        %v1099 = vadd.f32 %v946, %v1094
        %v1100 = vld [vmem:[%s9] sm:$0x1]
        %v1101 = vld [vmem:[%s10] sm:$0x1]
        %v1102 = vsel %vm408, %v1099, 0.0
        %1103 = vadd.xlane.f32.xlu0 %v1102
        %v1104 = vpop.xlane.xlu0 %1103
        %v1105 = vmul.f32 %v1104, %v920
        %v1106 = vmul.f32 %v1099, %v1099
        %v1107 = vsel %vm408, %v1106, 0.0
        %1108 = vadd.xlane.f32.xlu0 %v1107
        %v1109 = vpop.xlane.xlu0 %1108
        %v1110 = vmul.f32 %v1109, %v920
        %v1111 = vmul.f32 %v1105, %v1105
        %v1112 = vsub.f32 %v1110, %v1111
        %v1113 = vadd.f32 %v1112, 1e-05
        %v1114 = vrsqrt.pop %v1113
        %v1115 = vsub.f32 %v1099, %v1105
        %v1116 = vmul.f32 %v1115, %v1114
        %v1118 = vlaneseq
        %v1119 = vshrl.u32 %v1118, 7
        %v1120 = vsub.s32 0, %v1119
        %v1121 = vrot.slane %v1100, %v1120
        %v1123 = vmul.f32 %v1116, %v1121
        %v1125 = vlaneseq
        %v1126 = vshrl.u32 %v1125, 7
        %v1127 = vsub.s32 0, %v1126
        %v1128 = vrot.slane %v1101, %v1127
        %v1130 = vadd.f32 %v1123, %v1128
        %1131 = vst.msk [vmem:[%s377] sm:$0xff] %vm408, %v1130
        %s1132 = sand.u32 %s269, 1
        %s1133 = scalar_lea.sflag [#allocation4], %s1132
        %s1134 = sand.u32 %s269, 1
        %s1135 = smul.addr %s1134, 8
        %s1136 = scalar_lea.vmem [#allocation3], %s1135
        // Predicated region
        $region65: #{tpu_custom_call.1} parent=63 // pred_check
          %p1137 = pneg %p279
        $region66: #{tpu_custom_call.1} parent=63 // pred_check_branch
          %1139 = sbr.rel (%p1137) target = $region68
        $region67: #{tpu_custom_call.1} parent=63 // pred_region
          %s1141 = ssub.s32 128, 128
          %1142 = vsyncadd %s1133, %s1141
          %s1143 = smul.addr %s25, 128
          %s1144 = scalar_lea.hbm %s11, %s1143
          %s1146 = sshll.u32 %s1136, 4
          %s1147 = int_to_ptr.vmem [resolvable:$true] %s1146
          %1149 = dma.vmem_to_hbm [thread:$0]  %s1147, 128, %s1144, %s1133
        $region68: #{tpu_custom_call.1} parent=63 // pred_fallthru
          _
      $region64: #{tpu_custom_call.1} parent=5 // pred_fallthru
        _
      %p1150 = scmp.le.s32.totalorder 2, %s20
      // Predicated region
      $region69: #{tpu_custom_call.1} parent=5 // pred_check
        %p1151 = pneg %p1150
      $region70: #{tpu_custom_call.1} parent=5 // pred_check_branch
        %1153 = sbr.rel (%p1151) target = $region72
      $region71: #{tpu_custom_call.1} parent=5 // pred_region
        %s1154 = ssub.s32 %s20, 2
        // Predicated region
        $region73: #{tpu_custom_call.1} parent=71 // pred_check
          %p1155 = pneg %p285
        $region74: #{tpu_custom_call.1} parent=71 // pred_check_branch
          %1157 = sbr.rel (%p1155) target = $region76
        $region75: #{tpu_custom_call.1} parent=71 // pred_region
          %s1158 = sand.u32 %s270, 1
          %s1159 = scalar_lea.sflag [#allocation4], %s1158
          %s1160 = sand.u32 %s270, 1
          %s1161 = smul.addr %s1160, 8
          %s1162 = scalar_lea.vmem [#allocation3], %s1161
          %1163 = dma.done %s1159, 128
        $region76: #{tpu_custom_call.1} parent=71 // pred_fallthru
          _
      $region72: #{tpu_custom_call.1} parent=5 // pred_fallthru
        _
    $region6: #{tpu_custom_call.1} parent=1 // loop_footer
      %s24 = sadd.s32 1, %s20
    $region7: #{tpu_custom_call.1} parent=1 // loop_footer_branch
      %19 = sbr.rel target = $region3
    $region8: #{tpu_custom_call.1} parent=1 // loop_exit
      _
    %1164 = vsyncpa [#allocation4], 1
    %s1165 = scalar_lea.sflag [#allocation4], 1
    %1166 = vsyncpa %s1165, 1

</llo_original>
